<compile_context>
chip_gen: v7x
topology: tpu7x:2x2x1
jax: 0.10.0
libtpu: 0.0.40
codegen_flags: <defaults>
</compile_context>

<pallas_src>
import functools
import numpy as np
import jax
import jax.numpy as jnp
from jax.experimental import pallas as pl
from jax.experimental.pallas import tpu as pltpu

BN_EPS = 1e-5
KH = KW = 3
STRIDE = 2
PAD = 1
LANE = 128                       # lane-dense output width


def _out_dim(n):
    return (n + 2 * PAD - KH) // STRIDE + 1


def _round_up(n, m):
    return ((n + m - 1) // m) * m


# ----------------------------- Pallas kernel ----------------------------------
def _fused_conv_embedding_kernel(p1_ref, w1_ref, b1_ref, g_ref, w2_ref, b2_ref, o_ref):
    """Single-step fused kernel (everything lives in VMEM).

    p1_ref: (M1p, 9)        layer-1 im2col rows (Cin=1)
    w1_ref: (9, C1)         layer-1 weights with BN1 scale folded in
    b1_ref: (1, C1)         layer-1 folded BN bias
    g_ref : (9, M2p, M1p)   constant 0/1 tap-selection matrices (layer-2 im2col)
    w2_ref: (9, C1, C2p)    layer-2 per-tap weights with BN2 scale folded, padded to 128
    b2_ref: (1, C2p)        layer-2 folded BN bias (padded)
    o_ref : (M2p, C2p)      output rows (lane-dense, 128 wide)
    """
    # ---- layer 1: conv-as-matmul + bias + ReLU ----
    h1 = jnp.dot(p1_ref[...], w1_ref[...], preferred_element_type=jnp.float32)
    h1 = jnp.maximum(h1 + b1_ref[...], 0.0)                       # (M1p, C1)

    # ---- layer 2: im2col via 9 constant tap-selection matmuls, accumulate ----
    acc = jnp.zeros(o_ref.shape, jnp.float32)                     # (M2p, C2p)
    for t in range(KH * KW):                                      # static unroll
        sel = jnp.dot(g_ref[t], h1, preferred_element_type=jnp.float32)        # (M2p, C1)
        acc = acc + jnp.dot(sel, w2_ref[t], preferred_element_type=jnp.float32)
    o_ref[...] = jnp.maximum(acc + b2_ref[...], 0.0)


# ----------------------------- one-time preparation ----------------------------
def prepare_conv_embedding(params, batch, seq_len, input_dim=4):
    """Fold BN into weights, reshape to matmul form, pad for lane density and build
    the constant layer-2 tap-selection matrices.  Done once, outside the hot path."""
    (w1, g1, be1, m1, v1), (w2, g2, be2, m2, v2) = params
    c1 = int(w1.shape[0])
    c2 = int(w2.shape[0])

    assert seq_len % input_dim == 0
    H = seq_len // input_dim
    W = input_dim
    Ho1, Wo1 = _out_dim(H), _out_dim(W)
    Ho2, Wo2 = _out_dim(Ho1), _out_dim(Wo1)
    M1 = batch * Ho1 * Wo1
    M2 = batch * Ho2 * Wo2
    M1p = _round_up(M1, 8)
    M2p = _round_up(M2, 8)
    c2p = _round_up(c2, LANE)

    # --- fold BatchNorm (inference mode) into conv weights / bias ---
    s1 = g1 / jnp.sqrt(v1 + BN_EPS)
    s2 = g2 / jnp.sqrt(v2 + BN_EPS)
    # PyTorch OIHW -> (kh*kw*Cin, Cout), rows ordered (ki, kj, cin)
    w1_mat = jnp.transpose(w1, (2, 3, 1, 0)).reshape(KH * KW * w1.shape[1], c1)
    w1_f = (w1_mat * s1[None, :]).astype(jnp.float32)             # (9, C1)
    b1_f = (be1 - m1 * s1).reshape(1, c1).astype(jnp.float32)

    w2_taps = jnp.transpose(w2, (2, 3, 1, 0)).reshape(KH * KW, c1, c2)
    w2_f = (w2_taps * s2[None, None, :]).astype(jnp.float32)
    w2_f = jnp.pad(w2_f, ((0, 0), (0, 0), (0, c2p - c2)))          # (9, C1, 128)
    b2_f = jnp.pad((be2 - m2 * s2).reshape(1, c2).astype(jnp.float32),
                   ((0, 0), (0, c2p - c2)))                        # (1, 128)

    # --- constant 0/1 selection matrices implementing the layer-2 im2col ---
    g_sel = np.zeros((KH * KW, M2p, M1p), np.float32)
    for b in range(batch):
        for i2 in range(Ho2):
            for j2 in range(Wo2):
                m = b * Ho2 * Wo2 + i2 * Wo2 + j2
                for ki in range(KH):
                    for kj in range(KW):
                        i1 = STRIDE * i2 + ki - PAD
                        j1 = STRIDE * j2 + kj - PAD
                        if 0 <= i1 < Ho1 and 0 <= j1 < Wo1:
                            r1 = b * Ho1 * Wo1 + i1 * Wo1 + j1
                            g_sel[ki * KW + kj, m, r1] = 1.0
    g_sel = jnp.asarray(g_sel)

    meta = dict(batch=batch, H=H, W=W, Ho1=Ho1, Wo1=Wo1, Ho2=Ho2, Wo2=Wo2,
                M1=M1, M1p=M1p, M2=M2, M2p=M2p, c1=c1, c2=c2, c2p=c2p)
    return (w1_f, b1_f, g_sel, w2_f, b2_f), meta


# ----------------------------- per-call forward --------------------------------
def _im2col_layer1(x_nhwc, Ho, Wo):
    """Layer-1 im2col (Cin=1): (B, H, W, 1) -> (B*Ho*Wo, 9). Pure data rearrangement."""
    B, _, _, C = x_nhwc.shape
    xp = jnp.pad(x_nhwc, ((0, 0), (PAD, PAD), (PAD, PAD), (0, 0)))
    taps = []
    for i in range(KH):
        for j in range(KW):
            taps.append(xp[:, i:i + STRIDE * Ho:STRIDE, j:j + STRIDE * Wo:STRIDE, :])
    p = jnp.stack(taps, axis=3)                                    # (B, Ho, Wo, 9, C)
    return p.reshape(B * Ho * Wo, KH * KW * C)


def make_conv_embedding(params, batch, seq_len, input_dim=4):
    """Returns a jitted forward: x (batch, seq_len) -> (Ho2, batch, 32*Wo2)."""
    (w1_f, b1_f, g_sel, w2_f, b2_f), meta = prepare_conv_embedding(
        params, batch, seq_len, input_dim)
    M1p, M2p, c2p = meta["M1p"], meta["M2p"], meta["c2p"]
    K1 = KH * KW

    fused = pl.pallas_call(
        _fused_conv_embedding_kernel,
        out_shape=jax.ShapeDtypeStruct((M2p, c2p), jnp.float32),
        grid=(1,),                                   # single step: no per-tile overhead
        in_specs=[
            pl.BlockSpec((M1p, K1), lambda i: (0, 0)),
            pl.BlockSpec(tuple(w1_f.shape), lambda i: (0, 0)),
            pl.BlockSpec(tuple(b1_f.shape), lambda i: (0, 0)),
            pl.BlockSpec(tuple(g_sel.shape), lambda i: (0, 0, 0)),
            pl.BlockSpec(tuple(w2_f.shape), lambda i: (0, 0, 0)),
            pl.BlockSpec(tuple(b2_f.shape), lambda i: (0, 0)),
        ],
        out_specs=pl.BlockSpec((M2p, c2p), lambda i: (0, 0)),
        compiler_params=pltpu.CompilerParams(
            dimension_semantics=("arbitrary",)),     # 1 tiny step: skip megacore sharding
    )

    def forward(x):
        B = meta["batch"]
        h = x.reshape(B, 1, meta["H"], meta["W"])                  # NCHW view, Cin=1
        h = jnp.transpose(h, (0, 2, 3, 1))                         # -> NHWC
        p1 = _im2col_layer1(h, meta["Ho1"], meta["Wo1"])           # (M1, 9)
        p1 = jnp.pad(p1, ((0, M1p - meta["M1"]), (0, 0)))
        out = fused(p1, w1_f, b1_f, g_sel, w2_f, b2_f)             # (M2p, 128)
        out = out[:meta["M2"], :meta["c2"]]                        # (B*Ho2*Wo2, C2)
        out = out.reshape(B, meta["Ho2"], meta["Wo2"], meta["c2"]) # NHWC
        out = jnp.transpose(out, (0, 1, 3, 2))                     # (B, Ho2, C2, Wo2)
        out = out.reshape(B, meta["Ho2"], meta["c2"] * meta["Wo2"])
        return jnp.transpose(out, (1, 0, 2))                       # (Ho2, B, C2*Wo2)

    return jax.jit(forward)


# ----------------------------- pure-JAX reference ------------------------------
def reference_forward(x, params):
    B = x.shape[0]
    h = x.reshape(B, 1, -1, 4)
    for (w, gamma, beta, mean, var) in params:
        h = jax.lax.conv_general_dilated(
            h, w, window_strides=(2, 2), padding=((1, 1), (1, 1)),
            dimension_numbers=("NCHW", "OIHW", "NCHW"))
        s = gamma / jnp.sqrt(var + BN_EPS)
        b = beta - mean * s
        h = jnp.maximum(h * s[None, :, None, None] + b[None, :, None, None], 0.0)
    h = jnp.transpose(h, (0, 2, 1, 3))
    h = h.reshape(h.shape[0], h.shape[1], -1)
    return jnp.transpose(h, (1, 0, 2))


# ----------------------------- parameter init ----------------------------------
def make_params(key):
    """Two Blocks: Conv2d(1,32,3,stride=2,pad=1,bias=False)+BN(32), Conv2d(32,32,3)+BN(32)."""
    # TODO(synk): BatchNorm2d training-mode running-stat updates are not modeled
    # (inference fold only), matching eval() semantics of the PyTorch module.
    params = []
    for (c_in, c_out) in [(1, 32), (32, 32)]:
        key, kw_, kg, kb, km, kv = jax.random.split(key, 6)
        fan_in = c_in * 3 * 3
        w = jax.random.normal(kw_, (c_out, c_in, 3, 3), jnp.float32) / jnp.sqrt(fan_in)
        gamma = 1.0 + 0.1 * jax.random.normal(kg, (c_out,), jnp.float32)
        beta = 0.1 * jax.random.normal(kb, (c_out,), jnp.float32)
        mean = 0.1 * jax.random.normal(km, (c_out,), jnp.float32)
        var = 1.0 + 0.1 * jax.random.uniform(kv, (c_out,), jnp.float32)
        params.append((w, gamma, beta, mean, var))
    return params


if __name__ == "__main__":
    key = jax.random.PRNGKey(0)
    key, kx = jax.random.split(key)
    params = make_params(key)

    # x: (B, L) -> view(B, 1, H=16, 4); final output (T=4, B=2, 32)
    B, L = 2, 64
    x = jax.random.normal(kx, (B, L), jnp.float32)

    forward = make_conv_embedding(params, B, L)
    out = jax.block_until_ready(forward(x))
    ref = jax.block_until_ready(reference_forward(x, params))

    assert out.shape == (4, 2, 32), out.shape
    assert jnp.allclose(out, ref, rtol=1e-4, atol=1e-4), float(jnp.max(jnp.abs(out - ref)))
    print("KERNEL_OK")
</pallas_src>

<mosaic_0001>
module attributes {stable_mosaic.version = 11 : i64} {
  func.func @_fused_conv_embedding_kernel(%arg0: i32, %arg1: memref<32x9xf32, #tpu.memory_space<vmem>>, %arg2: memref<9x32xf32, #tpu.memory_space<vmem>>, %arg3: memref<1x32xf32, #tpu.memory_space<vmem>>, %arg4: memref<9x8x32xf32, #tpu.memory_space<vmem>>, %arg5: memref<9x32x128xf32, #tpu.memory_space<vmem>>, %arg6: memref<1x128xf32, #tpu.memory_space<vmem>>, %arg7: memref<8x128xf32, #tpu.memory_space<vmem>>) attributes {dimension_semantics = [#tpu.dimension_semantics<arbitrary>], iteration_bounds = array<i64: 1>, scalar_prefetch = 0 : i64, scratch_operands = 0 : i64, tpu.core_type = #tpu.core_type<tc>, window_params = [{pipeline_mode = #tpu.pipeline_mode<synchronous>, transform_indices = @transform_0, window_bounds = array<i64: 32, 9>}, {pipeline_mode = #tpu.pipeline_mode<synchronous>, transform_indices = @transform_1, window_bounds = array<i64: 9, 32>}, {pipeline_mode = #tpu.pipeline_mode<synchronous>, transform_indices = @transform_2, window_bounds = array<i64: 1, 32>}, {pipeline_mode = #tpu.pipeline_mode<synchronous>, transform_indices = @transform_3, window_bounds = array<i64: 9, 8, 32>}, {pipeline_mode = #tpu.pipeline_mode<synchronous>, transform_indices = @transform_4, window_bounds = array<i64: 9, 32, 128>}, {pipeline_mode = #tpu.pipeline_mode<synchronous>, transform_indices = @transform_5, window_bounds = array<i64: 1, 128>}, {pipeline_mode = #tpu.pipeline_mode<synchronous>, transform_indices = @transform_6, window_bounds = array<i64: 8, 128>}]} {
    %c0 = arith.constant 0 : index
    %c0_0 = arith.constant 0 : index
    %0 = vector.load %arg1[%c0, %c0_0] : memref<32x9xf32, #tpu.memory_space<vmem>>, vector<32x9xf32>
    %c0_1 = arith.constant 0 : index
    %c0_2 = arith.constant 0 : index
    %1 = vector.load %arg2[%c0_1, %c0_2] : memref<9x32xf32, #tpu.memory_space<vmem>>, vector<9x32xf32>
    %cst = arith.constant dense<0.000000e+00> : vector<32x32xf32>
    %2 = tpu.matmul %0, %1, %cst {dimension_numbers = #tpu.dot_dimension_numbers<[1], [0], [0], [1], [0, 0, 1, 1], [], []>} : vector<32x9xf32>, vector<9x32xf32>, vector<32x32xf32> -> vector<32x32xf32>
    %c0_3 = arith.constant 0 : index
    %c0_4 = arith.constant 0 : index
    %3 = vector.load %arg3[%c0_3, %c0_4] : memref<1x32xf32, #tpu.memory_space<vmem>>, vector<1x32xf32>
    %4 = vector.broadcast %3 : vector<1x32xf32> to vector<32x32xf32>
    %5 = arith.addf %2, %4 : vector<32x32xf32>
    %cst_5 = arith.constant 0.000000e+00 : f32
    %6 = vector.broadcast %cst_5 : f32 to vector<32x32xf32>
    %7 = arith.maximumf %5, %6 : vector<32x32xf32>
    %cst_6 = arith.constant 0.000000e+00 : f32
    %8 = vector.broadcast %cst_6 : f32 to vector<8x128xf32>
    %c0_7 = arith.constant 0 : index
    %c0_8 = arith.constant 0 : index
    %c0_9 = arith.constant 0 : index
    %9 = vector.load %arg4[%c0_7, %c0_8, %c0_9] : memref<9x8x32xf32, #tpu.memory_space<vmem>>, vector<1x8x32xf32>
    %10 = vector.shape_cast %9 : vector<1x8x32xf32> to vector<8x32xf32>
    %cst_10 = arith.constant dense<0.000000e+00> : vector<8x32xf32>
    %11 = tpu.matmul %10, %7, %cst_10 {dimension_numbers = #tpu.dot_dimension_numbers<[1], [0], [0], [1], [0, 0, 1, 1], [], []>} : vector<8x32xf32>, vector<32x32xf32>, vector<8x32xf32> -> vector<8x32xf32>
    %c0_11 = arith.constant 0 : index
    %c0_12 = arith.constant 0 : index
    %c0_13 = arith.constant 0 : index
    %12 = vector.load %arg5[%c0_11, %c0_12, %c0_13] : memref<9x32x128xf32, #tpu.memory_space<vmem>>, vector<1x32x128xf32>
    %13 = vector.shape_cast %12 : vector<1x32x128xf32> to vector<32x128xf32>
    %cst_14 = arith.constant dense<0.000000e+00> : vector<8x128xf32>
    %14 = tpu.matmul %11, %13, %cst_14 {dimension_numbers = #tpu.dot_dimension_numbers<[1], [0], [0], [1], [0, 0, 1, 1], [], []>} : vector<8x32xf32>, vector<32x128xf32>, vector<8x128xf32> -> vector<8x128xf32>
    %15 = arith.addf %8, %14 : vector<8x128xf32>
    %c1 = arith.constant 1 : index
    %c0_15 = arith.constant 0 : index
    %c0_16 = arith.constant 0 : index
    %16 = vector.load %arg4[%c1, %c0_15, %c0_16] : memref<9x8x32xf32, #tpu.memory_space<vmem>>, vector<1x8x32xf32>
    %17 = vector.shape_cast %16 : vector<1x8x32xf32> to vector<8x32xf32>
    %cst_17 = arith.constant dense<0.000000e+00> : vector<8x32xf32>
    %18 = tpu.matmul %17, %7, %cst_17 {dimension_numbers = #tpu.dot_dimension_numbers<[1], [0], [0], [1], [0, 0, 1, 1], [], []>} : vector<8x32xf32>, vector<32x32xf32>, vector<8x32xf32> -> vector<8x32xf32>
    %c1_18 = arith.constant 1 : index
    %c0_19 = arith.constant 0 : index
    %c0_20 = arith.constant 0 : index
    %19 = vector.load %arg5[%c1_18, %c0_19, %c0_20] : memref<9x32x128xf32, #tpu.memory_space<vmem>>, vector<1x32x128xf32>
    %20 = vector.shape_cast %19 : vector<1x32x128xf32> to vector<32x128xf32>
    %cst_21 = arith.constant dense<0.000000e+00> : vector<8x128xf32>
    %21 = tpu.matmul %18, %20, %cst_21 {dimension_numbers = #tpu.dot_dimension_numbers<[1], [0], [0], [1], [0, 0, 1, 1], [], []>} : vector<8x32xf32>, vector<32x128xf32>, vector<8x128xf32> -> vector<8x128xf32>
    %22 = arith.addf %15, %21 : vector<8x128xf32>
    %c2 = arith.constant 2 : index
    %c0_22 = arith.constant 0 : index
    %c0_23 = arith.constant 0 : index
    %23 = vector.load %arg4[%c2, %c0_22, %c0_23] : memref<9x8x32xf32, #tpu.memory_space<vmem>>, vector<1x8x32xf32>
    %24 = vector.shape_cast %23 : vector<1x8x32xf32> to vector<8x32xf32>
    %cst_24 = arith.constant dense<0.000000e+00> : vector<8x32xf32>
    %25 = tpu.matmul %24, %7, %cst_24 {dimension_numbers = #tpu.dot_dimension_numbers<[1], [0], [0], [1], [0, 0, 1, 1], [], []>} : vector<8x32xf32>, vector<32x32xf32>, vector<8x32xf32> -> vector<8x32xf32>
    %c2_25 = arith.constant 2 : index
    %c0_26 = arith.constant 0 : index
    %c0_27 = arith.constant 0 : index
    %26 = vector.load %arg5[%c2_25, %c0_26, %c0_27] : memref<9x32x128xf32, #tpu.memory_space<vmem>>, vector<1x32x128xf32>
    %27 = vector.shape_cast %26 : vector<1x32x128xf32> to vector<32x128xf32>
    %cst_28 = arith.constant dense<0.000000e+00> : vector<8x128xf32>
    %28 = tpu.matmul %25, %27, %cst_28 {dimension_numbers = #tpu.dot_dimension_numbers<[1], [0], [0], [1], [0, 0, 1, 1], [], []>} : vector<8x32xf32>, vector<32x128xf32>, vector<8x128xf32> -> vector<8x128xf32>
    %29 = arith.addf %22, %28 : vector<8x128xf32>
    %c3 = arith.constant 3 : index
    %c0_29 = arith.constant 0 : index
    %c0_30 = arith.constant 0 : index
    %30 = vector.load %arg4[%c3, %c0_29, %c0_30] : memref<9x8x32xf32, #tpu.memory_space<vmem>>, vector<1x8x32xf32>
    %31 = vector.shape_cast %30 : vector<1x8x32xf32> to vector<8x32xf32>
    %cst_31 = arith.constant dense<0.000000e+00> : vector<8x32xf32>
    %32 = tpu.matmul %31, %7, %cst_31 {dimension_numbers = #tpu.dot_dimension_numbers<[1], [0], [0], [1], [0, 0, 1, 1], [], []>} : vector<8x32xf32>, vector<32x32xf32>, vector<8x32xf32> -> vector<8x32xf32>
    %c3_32 = arith.constant 3 : index
    %c0_33 = arith.constant 0 : index
    %c0_34 = arith.constant 0 : index
    %33 = vector.load %arg5[%c3_32, %c0_33, %c0_34] : memref<9x32x128xf32, #tpu.memory_space<vmem>>, vector<1x32x128xf32>
    %34 = vector.shape_cast %33 : vector<1x32x128xf32> to vector<32x128xf32>
    %cst_35 = arith.constant dense<0.000000e+00> : vector<8x128xf32>
    %35 = tpu.matmul %32, %34, %cst_35 {dimension_numbers = #tpu.dot_dimension_numbers<[1], [0], [0], [1], [0, 0, 1, 1], [], []>} : vector<8x32xf32>, vector<32x128xf32>, vector<8x128xf32> -> vector<8x128xf32>
    %36 = arith.addf %29, %35 : vector<8x128xf32>
    %c4 = arith.constant 4 : index
    %c0_36 = arith.constant 0 : index
    %c0_37 = arith.constant 0 : index
    %37 = vector.load %arg4[%c4, %c0_36, %c0_37] : memref<9x8x32xf32, #tpu.memory_space<vmem>>, vector<1x8x32xf32>
    %38 = vector.shape_cast %37 : vector<1x8x32xf32> to vector<8x32xf32>
    %cst_38 = arith.constant dense<0.000000e+00> : vector<8x32xf32>
    %39 = tpu.matmul %38, %7, %cst_38 {dimension_numbers = #tpu.dot_dimension_numbers<[1], [0], [0], [1], [0, 0, 1, 1], [], []>} : vector<8x32xf32>, vector<32x32xf32>, vector<8x32xf32> -> vector<8x32xf32>
    %c4_39 = arith.constant 4 : index
    %c0_40 = arith.constant 0 : index
    %c0_41 = arith.constant 0 : index
    %40 = vector.load %arg5[%c4_39, %c0_40, %c0_41] : memref<9x32x128xf32, #tpu.memory_space<vmem>>, vector<1x32x128xf32>
    %41 = vector.shape_cast %40 : vector<1x32x128xf32> to vector<32x128xf32>
    %cst_42 = arith.constant dense<0.000000e+00> : vector<8x128xf32>
    %42 = tpu.matmul %39, %41, %cst_42 {dimension_numbers = #tpu.dot_dimension_numbers<[1], [0], [0], [1], [0, 0, 1, 1], [], []>} : vector<8x32xf32>, vector<32x128xf32>, vector<8x128xf32> -> vector<8x128xf32>
    %43 = arith.addf %36, %42 : vector<8x128xf32>
    %c5 = arith.constant 5 : index
    %c0_43 = arith.constant 0 : index
    %c0_44 = arith.constant 0 : index
    %44 = vector.load %arg4[%c5, %c0_43, %c0_44] : memref<9x8x32xf32, #tpu.memory_space<vmem>>, vector<1x8x32xf32>
    %45 = vector.shape_cast %44 : vector<1x8x32xf32> to vector<8x32xf32>
    %cst_45 = arith.constant dense<0.000000e+00> : vector<8x32xf32>
    %46 = tpu.matmul %45, %7, %cst_45 {dimension_numbers = #tpu.dot_dimension_numbers<[1], [0], [0], [1], [0, 0, 1, 1], [], []>} : vector<8x32xf32>, vector<32x32xf32>, vector<8x32xf32> -> vector<8x32xf32>
    %c5_46 = arith.constant 5 : index
    %c0_47 = arith.constant 0 : index
    %c0_48 = arith.constant 0 : index
    %47 = vector.load %arg5[%c5_46, %c0_47, %c0_48] : memref<9x32x128xf32, #tpu.memory_space<vmem>>, vector<1x32x128xf32>
    %48 = vector.shape_cast %47 : vector<1x32x128xf32> to vector<32x128xf32>
    %cst_49 = arith.constant dense<0.000000e+00> : vector<8x128xf32>
    %49 = tpu.matmul %46, %48, %cst_49 {dimension_numbers = #tpu.dot_dimension_numbers<[1], [0], [0], [1], [0, 0, 1, 1], [], []>} : vector<8x32xf32>, vector<32x128xf32>, vector<8x128xf32> -> vector<8x128xf32>
    %50 = arith.addf %43, %49 : vector<8x128xf32>
    %c6 = arith.constant 6 : index
    %c0_50 = arith.constant 0 : index
    %c0_51 = arith.constant 0 : index
    %51 = vector.load %arg4[%c6, %c0_50, %c0_51] : memref<9x8x32xf32, #tpu.memory_space<vmem>>, vector<1x8x32xf32>
    %52 = vector.shape_cast %51 : vector<1x8x32xf32> to vector<8x32xf32>
    %cst_52 = arith.constant dense<0.000000e+00> : vector<8x32xf32>
    %53 = tpu.matmul %52, %7, %cst_52 {dimension_numbers = #tpu.dot_dimension_numbers<[1], [0], [0], [1], [0, 0, 1, 1], [], []>} : vector<8x32xf32>, vector<32x32xf32>, vector<8x32xf32> -> vector<8x32xf32>
    %c6_53 = arith.constant 6 : index
    %c0_54 = arith.constant 0 : index
    %c0_55 = arith.constant 0 : index
    %54 = vector.load %arg5[%c6_53, %c0_54, %c0_55] : memref<9x32x128xf32, #tpu.memory_space<vmem>>, vector<1x32x128xf32>
    %55 = vector.shape_cast %54 : vector<1x32x128xf32> to vector<32x128xf32>
    %cst_56 = arith.constant dense<0.000000e+00> : vector<8x128xf32>
    %56 = tpu.matmul %53, %55, %cst_56 {dimension_numbers = #tpu.dot_dimension_numbers<[1], [0], [0], [1], [0, 0, 1, 1], [], []>} : vector<8x32xf32>, vector<32x128xf32>, vector<8x128xf32> -> vector<8x128xf32>
    %57 = arith.addf %50, %56 : vector<8x128xf32>
    %c7 = arith.constant 7 : index
    %c0_57 = arith.constant 0 : index
    %c0_58 = arith.constant 0 : index
    %58 = vector.load %arg4[%c7, %c0_57, %c0_58] : memref<9x8x32xf32, #tpu.memory_space<vmem>>, vector<1x8x32xf32>
    %59 = vector.shape_cast %58 : vector<1x8x32xf32> to vector<8x32xf32>
    %cst_59 = arith.constant dense<0.000000e+00> : vector<8x32xf32>
    %60 = tpu.matmul %59, %7, %cst_59 {dimension_numbers = #tpu.dot_dimension_numbers<[1], [0], [0], [1], [0, 0, 1, 1], [], []>} : vector<8x32xf32>, vector<32x32xf32>, vector<8x32xf32> -> vector<8x32xf32>
    %c7_60 = arith.constant 7 : index
    %c0_61 = arith.constant 0 : index
    %c0_62 = arith.constant 0 : index
    %61 = vector.load %arg5[%c7_60, %c0_61, %c0_62] : memref<9x32x128xf32, #tpu.memory_space<vmem>>, vector<1x32x128xf32>
    %62 = vector.shape_cast %61 : vector<1x32x128xf32> to vector<32x128xf32>
    %cst_63 = arith.constant dense<0.000000e+00> : vector<8x128xf32>
    %63 = tpu.matmul %60, %62, %cst_63 {dimension_numbers = #tpu.dot_dimension_numbers<[1], [0], [0], [1], [0, 0, 1, 1], [], []>} : vector<8x32xf32>, vector<32x128xf32>, vector<8x128xf32> -> vector<8x128xf32>
    %64 = arith.addf %57, %63 : vector<8x128xf32>
    %c8 = arith.constant 8 : index
    %c0_64 = arith.constant 0 : index
    %c0_65 = arith.constant 0 : index
    %65 = vector.load %arg4[%c8, %c0_64, %c0_65] : memref<9x8x32xf32, #tpu.memory_space<vmem>>, vector<1x8x32xf32>
    %66 = vector.shape_cast %65 : vector<1x8x32xf32> to vector<8x32xf32>
    %cst_66 = arith.constant dense<0.000000e+00> : vector<8x32xf32>
    %67 = tpu.matmul %66, %7, %cst_66 {dimension_numbers = #tpu.dot_dimension_numbers<[1], [0], [0], [1], [0, 0, 1, 1], [], []>} : vector<8x32xf32>, vector<32x32xf32>, vector<8x32xf32> -> vector<8x32xf32>
    %c8_67 = arith.constant 8 : index
    %c0_68 = arith.constant 0 : index
    %c0_69 = arith.constant 0 : index
    %68 = vector.load %arg5[%c8_67, %c0_68, %c0_69] : memref<9x32x128xf32, #tpu.memory_space<vmem>>, vector<1x32x128xf32>
    %69 = vector.shape_cast %68 : vector<1x32x128xf32> to vector<32x128xf32>
    %cst_70 = arith.constant dense<0.000000e+00> : vector<8x128xf32>
    %70 = tpu.matmul %67, %69, %cst_70 {dimension_numbers = #tpu.dot_dimension_numbers<[1], [0], [0], [1], [0, 0, 1, 1], [], []>} : vector<8x32xf32>, vector<32x128xf32>, vector<8x128xf32> -> vector<8x128xf32>
    %71 = arith.addf %64, %70 : vector<8x128xf32>
    %c0_71 = arith.constant 0 : index
    %c0_72 = arith.constant 0 : index
    %72 = vector.load %arg6[%c0_71, %c0_72] : memref<1x128xf32, #tpu.memory_space<vmem>>, vector<1x128xf32>
    %73 = vector.broadcast %72 : vector<1x128xf32> to vector<8x128xf32>
    %74 = arith.addf %71, %73 : vector<8x128xf32>
    %cst_73 = arith.constant 0.000000e+00 : f32
    %75 = vector.broadcast %cst_73 : f32 to vector<8x128xf32>
    %76 = arith.maximumf %74, %75 : vector<8x128xf32>
    %c0_74 = arith.constant 0 : index
    %c0_75 = arith.constant 0 : index
    %77 = vector.load %arg7[%c0_74, %c0_75] : memref<8x128xf32, #tpu.memory_space<vmem>>, vector<8x128xf32>
    tpu.vector_store %arg7[%c0_74, %c0_75], %76 {strides = array<i32>} : memref<8x128xf32, #tpu.memory_space<vmem>>, vector<8x128xf32>,
    return
  }
  func.func @transform_0(%arg0: i32) -> (i32, i32) {
    %c0_i32 = arith.constant 0 : i32
    %c0_i32_0 = arith.constant 0 : i32
    %c0_i32_1 = arith.constant 0 : i32
    return %c0_i32, %c0_i32_0 : i32, i32
  }
  func.func @transform_1(%arg0: i32) -> (i32, i32) {
    %c0_i32 = arith.constant 0 : i32
    %c0_i32_0 = arith.constant 0 : i32
    %c0_i32_1 = arith.constant 0 : i32
    return %c0_i32, %c0_i32_0 : i32, i32
  }
  func.func @transform_2(%arg0: i32) -> (i32, i32) {
    %c0_i32 = arith.constant 0 : i32
    %c0_i32_0 = arith.constant 0 : i32
    %c0_i32_1 = arith.constant 0 : i32
    return %c0_i32, %c0_i32_0 : i32, i32
  }
  func.func @transform_3(%arg0: i32) -> (i32, i32, i32) {
    %c0_i32 = arith.constant 0 : i32
    %c0_i32_0 = arith.constant 0 : i32
    %c0_i32_1 = arith.constant 0 : i32
    %c0_i32_2 = arith.constant 0 : i32
    return %c0_i32, %c0_i32_0, %c0_i32_1 : i32, i32, i32
  }
  func.func @transform_4(%arg0: i32) -> (i32, i32, i32) {
    %c0_i32 = arith.constant 0 : i32
    %c0_i32_0 = arith.constant 0 : i32
    %c0_i32_1 = arith.constant 0 : i32
    %c0_i32_2 = arith.constant 0 : i32
    return %c0_i32, %c0_i32_0, %c0_i32_1 : i32, i32, i32
  }
  func.func @transform_5(%arg0: i32) -> (i32, i32) {
    %c0_i32 = arith.constant 0 : i32
    %c0_i32_0 = arith.constant 0 : i32
    %c0_i32_1 = arith.constant 0 : i32
    return %c0_i32, %c0_i32_0 : i32, i32
  }
  func.func @transform_6(%arg0: i32) -> (i32, i32) {
    %c0_i32 = arith.constant 0 : i32
    %c0_i32_0 = arith.constant 0 : i32
    %c0_i32_1 = arith.constant 0 : i32
    return %c0_i32, %c0_i32_0 : i32, i32
  }
}

</mosaic_0001>

<llo_original>
// kernel: forward.1
$region0: #{forward.1}
  #allocation0 [shape = 'u32[]', space=smem, size = 0x4, offset = 0x4, fixed_abs, tag = 'smem constant byte address 0x4 - core index']
  #allocation1 [shape = 'u32[144,128]{1,0:T(1,128)}', space=vmem, size = 0x12000, scoped, tag = 'internal scratch']
  %s0 = inlined_call_operand.vmem [shape: f32[32,9], index: 0, kind: input, shape index: {}]
  %s1 = inlined_call_operand.vmem [shape: f32[9,32], index: 1, kind: input, shape index: {}]
  %s2 = inlined_call_operand.vmem [shape: f32[1,32], index: 2, kind: input, shape index: {}]
  %s3 = inlined_call_operand.vmem [shape: f32[9,8,32], index: 3, kind: input, shape index: {}]
  %s4 = inlined_call_operand.vmem [shape: f32[9,32,128], index: 4, kind: input, shape index: {}]
  %s5 = inlined_call_operand.vmem [shape: f32[1,128], index: 5, kind: input, shape index: {}]
  %s6 = inlined_call_operand.vmem [shape: f32[8,128], index: 6, kind: output, shape index: {}]
  %s7 = sld [smem:[#allocation0]]
  $region34: #{forward.1} parent=0
    _
  %s9 = ssub.s32 1, %s7
  %s10 = scalar_select 0, %s9, %s7
  // Predicated region
  $region2: #{forward.1} parent=0 // pred_check
    _
  $region3: #{forward.1} parent=0 // pred_check_branch
    %12 = sbr.rel (0) target = $region5
  $region4: #{forward.1} parent=0 // pred_region
    _
  $region5: #{forward.1} parent=0 // pred_fallthru
    _
  // Predicated region
  $region6: #{forward.1} parent=0 // pred_check
    _
  $region7: #{forward.1} parent=0 // pred_check_branch
    %14 = sbr.rel (0) target = $region9
  $region8: #{forward.1} parent=0 // pred_region
    _
  $region9: #{forward.1} parent=0 // pred_fallthru
    _
  // Predicated region
  $region10: #{forward.1} parent=0 // pred_check
    _
  $region11: #{forward.1} parent=0 // pred_check_branch
    %16 = sbr.rel (0) target = $region13
  $region12: #{forward.1} parent=0 // pred_region
    _
  $region13: #{forward.1} parent=0 // pred_fallthru
    _
  // Predicated region
  $region14: #{forward.1} parent=0 // pred_check
    _
  $region15: #{forward.1} parent=0 // pred_check_branch
    %18 = sbr.rel (0) target = $region17
  $region16: #{forward.1} parent=0 // pred_region
    _
  $region17: #{forward.1} parent=0 // pred_fallthru
    _
  // Predicated region
  $region18: #{forward.1} parent=0 // pred_check
    _
  $region19: #{forward.1} parent=0 // pred_check_branch
    %20 = sbr.rel (0) target = $region21
  $region20: #{forward.1} parent=0 // pred_region
    _
  $region21: #{forward.1} parent=0 // pred_fallthru
    _
  // Predicated region
  $region22: #{forward.1} parent=0 // pred_check
    _
  $region23: #{forward.1} parent=0 // pred_check_branch
    %22 = sbr.rel (0) target = $region25
  $region24: #{forward.1} parent=0 // pred_region
    _
  $region25: #{forward.1} parent=0 // pred_fallthru
    _
  %v23 = vld [vmem:[%s0] sm:$0xff]
  %v24 = vld [vmem:[%s0 + $0x8] sm:$0xff]
  %v25 = vld [vmem:[%s0 + $0x10] sm:$0xff]
  %v26 = vld [vmem:[%s0 + $0x18] sm:$0xff]
  %v27 = vld [vmem:[%s1] sm:$0xff]
  %v28 = vld [vmem:[%s1 + $0x8] sm:$0x1]
  %v29 = vld [vmem:[%s2] sm:$0x1]
  %v31 = vlaneseq
  %v32 = vshrl.u32 %v31, 7
  %v33 = vsub.s32 0, %v32
  %v34 = vrot.slane %v29, %v33
  %vm36 = vcmask 72704
  %v38 = vsel %vm36, %v23, 0
  %v41 = vsel %vm36, %v24, 0
  %v44 = vsel %vm36, %v25, 0
  %v47 = vsel %vm36, %v26, 0
  %vm49 = vcmask 1040384
  %v51 = vsel %vm49, %v28, 0
  %53 = vmatprep.subr.mxu0 0.0
  %54 = vmatpush1.msra.mxu0 %v27
  %55 = vmatprep.subr.mxu0 0.0
  %56 = vmatpush1.msra.mxu0 %v51
  %57 = vmatprep.subr.mxu0 0.0
  %58 = vmatpush1.msra.mxu0 0.0
  %59 = vmatprep.subr.mxu0 0.0
  %60 = vmatpush1.msra.mxu0 0.0
  %61 = vmatprep.subr.mxu0 0.0
  %62 = vmatpush1.msra.mxu0 0.0
  %63 = vmatprep.subr.mxu0 0.0
  %64 = vmatpush1.msra.mxu0 0.0
  %65 = vmatprep.subr.mxu0 0.0
  %66 = vmatpush1.msra.mxu0 0.0
  %67 = vmatprep.subr.mxu0 0.0
  %68 = vmatpush1.msra.mxu0 0.0
  %69 = vmatprep.subr.mxu0 0.0
  %70 = vmatpush1.msra.mxu0 0.0
  %71 = vmatprep.subr.mxu0 0.0
  %72 = vmatpush1.msra.mxu0 0.0
  %73 = vmatprep.subr.mxu0 0.0
  %74 = vmatpush1.msra.mxu0 0.0
  %75 = vmatprep.subr.mxu0 0.0
  %76 = vmatpush1.msra.mxu0 0.0
  %77 = vmatprep.subr.mxu0 0.0
  %78 = vmatpush1.msra.mxu0 0.0
  %79 = vmatprep.subr.mxu0 0.0
  %80 = vmatpush1.msra.mxu0 0.0
  %81 = vmatprep.subr.mxu0 0.0
  %82 = vmatpush1.msra.mxu0 0.0
  %83 = vmatprep.subr.mxu0 0.0
  %84 = vmatpush1.msra.mxu0 0.0
  %85 = vmatprep.subr.mxu0 0.0
  %86 = vmatpush1.msra.mxu0 0.0
  %87 = vmatprep.subr.mxu0 0.0
  %88 = vmatpush1.msra.mxu0 0.0
  %89 = vmatprep.subr.mxu0 0.0
  %90 = vmatpush1.msra.mxu0 0.0
  %91 = vmatprep.subr.mxu0 0.0
  %92 = vmatpush1.msra.mxu0 0.0
  %93 = vmatprep.subr.mxu0 0.0
  %94 = vmatpush1.msra.mxu0 0.0
  %95 = vmatprep.subr.mxu0 0.0
  %96 = vmatpush1.msra.mxu0 0.0
  %97 = vmatprep.subr.mxu0 0.0
  %98 = vmatpush1.msra.mxu0 0.0
  %99 = vmatprep.subr.mxu0 0.0
  %100 = vmatpush1.msra.mxu0 0.0
  %101 = vmatprep.subr.mxu0 0.0
  %102 = vmatpush1.msra.mxu0 0.0
  %103 = vmatprep.subr.mxu0 0.0
  %104 = vmatpush1.msra.mxu0 0.0
  %105 = vmatprep.subr.mxu0 0.0
  %106 = vmatpush1.msra.mxu0 0.0
  %107 = vmatprep.subr.mxu0 0.0
  %108 = vmatpush1.msra.mxu0 0.0
  %109 = vmatprep.subr.mxu0 0.0
  %110 = vmatpush1.msra.mxu0 0.0
  %111 = vmatprep.subr.mxu0 0.0
  %112 = vmatpush1.msra.mxu0 0.0
  %113 = vmatprep.subr.mxu0 0.0
  %114 = vmatpush1.msra.mxu0 0.0
  %115 = vmatprep.subr.mxu0 0.0
  %116 = vmatpush1.msra.mxu0 0.0
  %117 = vmatprep.mubr.f32.mxu0 0.0
  %118 = vmatmul.mubr.f32.gmra.mrb[0].mxu0 %v38
  %v119 = vpop.f32.mrb[0].mxu0
  %v120 = vadd.f32 %v34, %v119
  %v121 = vpop.f32.mrb[0].mxu0
  %122 = vmatprep.mubr.f32.mxu0 0.0
  %123 = vmatmul.mubr.f32.gmra.mrb[0].mxu0 %v41
  %v124 = vpop.f32.mrb[0].mxu0
  %v125 = vadd.f32 %v34, %v124
  %v126 = vpop.f32.mrb[0].mxu0
  %127 = vmatprep.mubr.f32.mxu0 0.0
  %128 = vmatmul.mubr.f32.gmra.mrb[0].mxu0 %v44
  %v129 = vpop.f32.mrb[0].mxu0
  %v130 = vadd.f32 %v34, %v129
  %v131 = vpop.f32.mrb[0].mxu0
  %132 = vmatprep.mubr.f32.mxu0 0.0
  %133 = vmatmul.mubr.f32.gmra.mrb[0].mxu0 %v47
  %v134 = vpop.f32.mrb[0].mxu0
  %v135 = vadd.f32 %v34, %v134
  %v136 = vpop.f32.mrb[0].mxu0
  %137 = vdwg.mxu0
  %v138 = vmax.f32 %v120, 0.0
  %v139 = vmax.f32 %v125, 0.0
  %v140 = vmax.f32 %v130, 0.0
  %v141 = vmax.f32 %v135, 0.0
  %v142 = vld [vmem:[%s3] sm:$0xff]
  %vm143 = vcmask 261120
  %v145 = vsel %vm143, %v142, 0
  %147 = vmatprep.subr.mxu0 0.0
  %148 = vmatpush1.msra.mxu0 %v138
  %149 = vmatprep.subr.mxu0 0.0
  %150 = vmatpush1.msra.mxu0 %v139
  %151 = vmatprep.subr.mxu0 0.0
  %152 = vmatpush1.msra.mxu0 %v140
  %153 = vmatprep.subr.mxu0 0.0
  %154 = vmatpush1.msra.mxu0 %v141
  %155 = vmatprep.subr.mxu0 0.0
  %156 = vmatpush1.msra.mxu0 0.0
  %157 = vmatprep.subr.mxu0 0.0
  %158 = vmatpush1.msra.mxu0 0.0
  %159 = vmatprep.subr.mxu0 0.0
  %160 = vmatpush1.msra.mxu0 0.0
  %161 = vmatprep.subr.mxu0 0.0
  %162 = vmatpush1.msra.mxu0 0.0
  %163 = vmatprep.subr.mxu0 0.0
  %164 = vmatpush1.msra.mxu0 0.0
  %165 = vmatprep.subr.mxu0 0.0
  %166 = vmatpush1.msra.mxu0 0.0
  %167 = vmatprep.subr.mxu0 0.0
  %168 = vmatpush1.msra.mxu0 0.0
  %169 = vmatprep.subr.mxu0 0.0
  %170 = vmatpush1.msra.mxu0 0.0
  %171 = vmatprep.subr.mxu0 0.0
  %172 = vmatpush1.msra.mxu0 0.0
  %173 = vmatprep.subr.mxu0 0.0
  %174 = vmatpush1.msra.mxu0 0.0
  %175 = vmatprep.subr.mxu0 0.0
  %176 = vmatpush1.msra.mxu0 0.0
  %177 = vmatprep.subr.mxu0 0.0
  %178 = vmatpush1.msra.mxu0 0.0
  %179 = vmatprep.subr.mxu0 0.0
  %180 = vmatpush1.msra.mxu0 0.0
  %181 = vmatprep.subr.mxu0 0.0
  %182 = vmatpush1.msra.mxu0 0.0
  %183 = vmatprep.subr.mxu0 0.0
  %184 = vmatpush1.msra.mxu0 0.0
  %185 = vmatprep.subr.mxu0 0.0
  %186 = vmatpush1.msra.mxu0 0.0
  %187 = vmatprep.subr.mxu0 0.0
  %188 = vmatpush1.msra.mxu0 0.0
  %189 = vmatprep.subr.mxu0 0.0
  %190 = vmatpush1.msra.mxu0 0.0
  %191 = vmatprep.subr.mxu0 0.0
  %192 = vmatpush1.msra.mxu0 0.0
  %193 = vmatprep.subr.mxu0 0.0
  %194 = vmatpush1.msra.mxu0 0.0
  %195 = vmatprep.subr.mxu0 0.0
  %196 = vmatpush1.msra.mxu0 0.0
  %197 = vmatprep.subr.mxu0 0.0
  %198 = vmatpush1.msra.mxu0 0.0
  %199 = vmatprep.subr.mxu0 0.0
  %200 = vmatpush1.msra.mxu0 0.0
  %201 = vmatprep.subr.mxu0 0.0
  %202 = vmatpush1.msra.mxu0 0.0
  %203 = vmatprep.subr.mxu0 0.0
  %204 = vmatpush1.msra.mxu0 0.0
  %205 = vmatprep.subr.mxu0 0.0
  %206 = vmatpush1.msra.mxu0 0.0
  %207 = vmatprep.subr.mxu0 0.0
  %208 = vmatpush1.msra.mxu0 0.0
  %209 = vmatprep.subr.mxu0 0.0
  %210 = vmatpush1.msra.mxu0 0.0
  %211 = vmatprep.mubr.f32.mxu0 0.0
  %212 = vmatmul.mubr.f32.gmra.mrb[0].mxu0 %v145
  %v213 = vpop.f32.mrb[0].mxu0
  %v214 = vadd.f32 0.0, %v213
  %v215 = vpop.f32.mrb[0].mxu0
  %216 = vdwg.mxu0
  %v217 = vld [vmem:[%s4] sm:$0xff]
  %v218 = vld [vmem:[%s4 + $0x8] sm:$0xff]
  %v219 = vld [vmem:[%s4 + $0x10] sm:$0xff]
  %v220 = vld [vmem:[%s4 + $0x18] sm:$0xff]
  %s221 = scalar_lea.vmem %s3, 8
  %v222 = vld [vmem:[%s221] sm:$0xff]
  %v224 = vsel %vm143, %v222, 0
  %226 = vmatprep.subr.mxu0 0.0
  %227 = vmatpush1.msra.mxu0 %v138
  %228 = vmatprep.subr.mxu0 0.0
  %229 = vmatpush1.msra.mxu0 %v139
  %230 = vmatprep.subr.mxu0 0.0
  %231 = vmatpush1.msra.mxu0 %v140
  %232 = vmatprep.subr.mxu0 0.0
  %233 = vmatpush1.msra.mxu0 %v141
  %234 = vmatprep.subr.mxu0 0.0
  %235 = vmatpush1.msra.mxu0 0.0
  %236 = vmatprep.subr.mxu0 0.0
  %237 = vmatpush1.msra.mxu0 0.0
  %238 = vmatprep.subr.mxu0 0.0
  %239 = vmatpush1.msra.mxu0 0.0
  %240 = vmatprep.subr.mxu0 0.0
  %241 = vmatpush1.msra.mxu0 0.0
  %242 = vmatprep.subr.mxu0 0.0
  %243 = vmatpush1.msra.mxu0 0.0
  %244 = vmatprep.subr.mxu0 0.0
  %245 = vmatpush1.msra.mxu0 0.0
  %246 = vmatprep.subr.mxu0 0.0
  %247 = vmatpush1.msra.mxu0 0.0
  %248 = vmatprep.subr.mxu0 0.0
  %249 = vmatpush1.msra.mxu0 0.0
  %250 = vmatprep.subr.mxu0 0.0
  %251 = vmatpush1.msra.mxu0 0.0
  %252 = vmatprep.subr.mxu0 0.0
  %253 = vmatpush1.msra.mxu0 0.0
  %254 = vmatprep.subr.mxu0 0.0
  %255 = vmatpush1.msra.mxu0 0.0
  %256 = vmatprep.subr.mxu0 0.0
  %257 = vmatpush1.msra.mxu0 0.0
  %258 = vmatprep.subr.mxu0 0.0
  %259 = vmatpush1.msra.mxu0 0.0
  %260 = vmatprep.subr.mxu0 0.0
  %261 = vmatpush1.msra.mxu0 0.0
  %262 = vmatprep.subr.mxu0 0.0
  %263 = vmatpush1.msra.mxu0 0.0
  %264 = vmatprep.subr.mxu0 0.0
  %265 = vmatpush1.msra.mxu0 0.0
  %266 = vmatprep.subr.mxu0 0.0
  %267 = vmatpush1.msra.mxu0 0.0
  %268 = vmatprep.subr.mxu0 0.0
  %269 = vmatpush1.msra.mxu0 0.0
  %270 = vmatprep.subr.mxu0 0.0
  %271 = vmatpush1.msra.mxu0 0.0
  %272 = vmatprep.subr.mxu0 0.0
  %273 = vmatpush1.msra.mxu0 0.0
  %274 = vmatprep.subr.mxu0 0.0
  %275 = vmatpush1.msra.mxu0 0.0
  %276 = vmatprep.subr.mxu0 0.0
  %277 = vmatpush1.msra.mxu0 0.0
  %278 = vmatprep.subr.mxu0 0.0
  %279 = vmatpush1.msra.mxu0 0.0
  %280 = vmatprep.subr.mxu0 0.0
  %281 = vmatpush1.msra.mxu0 0.0
  %282 = vmatprep.subr.mxu0 0.0
  %283 = vmatpush1.msra.mxu0 0.0
  %284 = vmatprep.subr.mxu0 0.0
  %285 = vmatpush1.msra.mxu0 0.0
  %286 = vmatprep.subr.mxu0 0.0
  %287 = vmatpush1.msra.mxu0 0.0
  %288 = vmatprep.subr.mxu0 0.0
  %289 = vmatpush1.msra.mxu0 0.0
  %290 = vmatprep.mubr.f32.mxu0 0.0
  %291 = vmatmul.mubr.f32.gmra.mrb[0].mxu0 %v224
  %v292 = vpop.f32.mrb[0].mxu0
  %v293 = vadd.f32 0.0, %v292
  %v294 = vpop.f32.mrb[0].mxu0
  %295 = vdwg.mxu0
  %s296 = scalar_lea.vmem %s4, 32
  %v297 = vld [vmem:[%s296] sm:$0xff]
  %v298 = vld [vmem:[%s296 + $0x8] sm:$0xff]
  %v299 = vld [vmem:[%s296 + $0x10] sm:$0xff]
  %v300 = vld [vmem:[%s296 + $0x18] sm:$0xff]
  %v302 = vsel %vm143, %v293, 0
  %304 = vmatprep.subr.mxu0 0.0
  %305 = vmatpush1.msra.mxu0 %v297
  %306 = vmatprep.subr.mxu0 0.0
  %307 = vmatpush1.msra.mxu0 %v298
  %308 = vmatprep.subr.mxu0 0.0
  %309 = vmatpush1.msra.mxu0 %v299
  %310 = vmatprep.subr.mxu0 0.0
  %311 = vmatpush1.msra.mxu0 %v300
  %312 = vmatprep.subr.mxu0 0.0
  %313 = vmatpush1.msra.mxu0 0.0
  %314 = vmatprep.subr.mxu0 0.0
  %315 = vmatpush1.msra.mxu0 0.0
  %316 = vmatprep.subr.mxu0 0.0
  %317 = vmatpush1.msra.mxu0 0.0
  %318 = vmatprep.subr.mxu0 0.0
  %319 = vmatpush1.msra.mxu0 0.0
  %320 = vmatprep.subr.mxu0 0.0
  %321 = vmatpush1.msra.mxu0 0.0
  %322 = vmatprep.subr.mxu0 0.0
  %323 = vmatpush1.msra.mxu0 0.0
  %324 = vmatprep.subr.mxu0 0.0
  %325 = vmatpush1.msra.mxu0 0.0
  %326 = vmatprep.subr.mxu0 0.0
  %327 = vmatpush1.msra.mxu0 0.0
  %328 = vmatprep.subr.mxu0 0.0
  %329 = vmatpush1.msra.mxu0 0.0
  %330 = vmatprep.subr.mxu0 0.0
  %331 = vmatpush1.msra.mxu0 0.0
  %332 = vmatprep.subr.mxu0 0.0
  %333 = vmatpush1.msra.mxu0 0.0
  %334 = vmatprep.subr.mxu0 0.0
  %335 = vmatpush1.msra.mxu0 0.0
  %336 = vmatprep.subr.mxu0 0.0
  %337 = vmatpush1.msra.mxu0 0.0
  %338 = vmatprep.subr.mxu0 0.0
  %339 = vmatpush1.msra.mxu0 0.0
  %340 = vmatprep.subr.mxu0 0.0
  %341 = vmatpush1.msra.mxu0 0.0
  %342 = vmatprep.subr.mxu0 0.0
  %343 = vmatpush1.msra.mxu0 0.0
  %344 = vmatprep.subr.mxu0 0.0
  %345 = vmatpush1.msra.mxu0 0.0
  %346 = vmatprep.subr.mxu0 0.0
  %347 = vmatpush1.msra.mxu0 0.0
  %348 = vmatprep.subr.mxu0 0.0
  %349 = vmatpush1.msra.mxu0 0.0
  %350 = vmatprep.subr.mxu0 0.0
  %351 = vmatpush1.msra.mxu0 0.0
  %352 = vmatprep.subr.mxu0 0.0
  %353 = vmatpush1.msra.mxu0 0.0
  %354 = vmatprep.subr.mxu0 0.0
  %355 = vmatpush1.msra.mxu0 0.0
  %356 = vmatprep.subr.mxu0 0.0
  %357 = vmatpush1.msra.mxu0 0.0
  %358 = vmatprep.subr.mxu0 0.0
  %359 = vmatpush1.msra.mxu0 0.0
  %360 = vmatprep.subr.mxu0 0.0
  %361 = vmatpush1.msra.mxu0 0.0
  %362 = vmatprep.subr.mxu0 0.0
  %363 = vmatpush1.msra.mxu0 0.0
  %364 = vmatprep.subr.mxu0 0.0
  %365 = vmatpush1.msra.mxu0 0.0
  %366 = vmatprep.subr.mxu0 0.0
  %367 = vmatpush1.msra.mxu0 0.0
  %368 = vmatprep.mubr.f32.mxu0 0.0
  %369 = vmatmul.mubr.f32.gmra.mrb[0].mxu0 %v302
  %v370 = vpop.f32.mrb[0].mxu0
  %v371 = vadd.f32 0.0, %v370
  %v372 = vpop.f32.mrb[0].mxu0
  %373 = vdwg.mxu0
  %v375 = vsel %vm143, %v214, 0
  %377 = vmatprep.subr.mxu0 0.0
  %378 = vmatpush1.msra.mxu0 %v217
  %379 = vmatprep.subr.mxu0 0.0
  %380 = vmatpush1.msra.mxu0 %v218
  %381 = vmatprep.subr.mxu0 0.0
  %382 = vmatpush1.msra.mxu0 %v219
  %383 = vmatprep.subr.mxu0 0.0
  %384 = vmatpush1.msra.mxu0 %v220
  %385 = vmatprep.subr.mxu0 0.0
  %386 = vmatpush1.msra.mxu0 0.0
  %387 = vmatprep.subr.mxu0 0.0
  %388 = vmatpush1.msra.mxu0 0.0
  %389 = vmatprep.subr.mxu0 0.0
  %390 = vmatpush1.msra.mxu0 0.0
  %391 = vmatprep.subr.mxu0 0.0
  %392 = vmatpush1.msra.mxu0 0.0
  %393 = vmatprep.subr.mxu0 0.0
  %394 = vmatpush1.msra.mxu0 0.0
  %395 = vmatprep.subr.mxu0 0.0
  %396 = vmatpush1.msra.mxu0 0.0
  %397 = vmatprep.subr.mxu0 0.0
  %398 = vmatpush1.msra.mxu0 0.0
  %399 = vmatprep.subr.mxu0 0.0
  %400 = vmatpush1.msra.mxu0 0.0
  %401 = vmatprep.subr.mxu0 0.0
  %402 = vmatpush1.msra.mxu0 0.0
  %403 = vmatprep.subr.mxu0 0.0
  %404 = vmatpush1.msra.mxu0 0.0
  %405 = vmatprep.subr.mxu0 0.0
  %406 = vmatpush1.msra.mxu0 0.0
  %407 = vmatprep.subr.mxu0 0.0
  %408 = vmatpush1.msra.mxu0 0.0
  %409 = vmatprep.subr.mxu0 0.0
  %410 = vmatpush1.msra.mxu0 0.0
  %411 = vmatprep.subr.mxu0 0.0
  %412 = vmatpush1.msra.mxu0 0.0
  %413 = vmatprep.subr.mxu0 0.0
  %414 = vmatpush1.msra.mxu0 0.0
  %415 = vmatprep.subr.mxu0 0.0
  %416 = vmatpush1.msra.mxu0 0.0
  %417 = vmatprep.subr.mxu0 0.0
  %418 = vmatpush1.msra.mxu0 0.0
  %419 = vmatprep.subr.mxu0 0.0
  %420 = vmatpush1.msra.mxu0 0.0
  %421 = vmatprep.subr.mxu0 0.0
  %422 = vmatpush1.msra.mxu0 0.0
  %423 = vmatprep.subr.mxu0 0.0
  %424 = vmatpush1.msra.mxu0 0.0
  %425 = vmatprep.subr.mxu0 0.0
  %426 = vmatpush1.msra.mxu0 0.0
  %427 = vmatprep.subr.mxu0 0.0
  %428 = vmatpush1.msra.mxu0 0.0
  %429 = vmatprep.subr.mxu0 0.0
  %430 = vmatpush1.msra.mxu0 0.0
  %431 = vmatprep.subr.mxu0 0.0
  %432 = vmatpush1.msra.mxu0 0.0
  %433 = vmatprep.subr.mxu0 0.0
  %434 = vmatpush1.msra.mxu0 0.0
  %435 = vmatprep.subr.mxu0 0.0
  %436 = vmatpush1.msra.mxu0 0.0
  %437 = vmatprep.subr.mxu0 0.0
  %438 = vmatpush1.msra.mxu0 0.0
  %439 = vmatprep.subr.mxu0 0.0
  %440 = vmatpush1.msra.mxu0 0.0
  %441 = vmatprep.mubr.f32.mxu0 0.0
  %442 = vmatmul.mubr.f32.gmra.mrb[0].mxu0 %v375
  %v443 = vpop.f32.mrb[0].mxu0
  %v444 = vadd.f32 %v371, %v443
  %v445 = vpop.f32.mrb[0].mxu0
  %446 = vdwg.mxu0
  %s447 = scalar_lea.vmem %s3, 16
  %v448 = vld [vmem:[%s447] sm:$0xff]
  %v450 = vsel %vm143, %v448, 0
  %452 = vmatprep.subr.mxu0 0.0
  %453 = vmatpush1.msra.mxu0 %v138
  %454 = vmatprep.subr.mxu0 0.0
  %455 = vmatpush1.msra.mxu0 %v139
  %456 = vmatprep.subr.mxu0 0.0
  %457 = vmatpush1.msra.mxu0 %v140
  %458 = vmatprep.subr.mxu0 0.0
  %459 = vmatpush1.msra.mxu0 %v141
  %460 = vmatprep.subr.mxu0 0.0
  %461 = vmatpush1.msra.mxu0 0.0
  %462 = vmatprep.subr.mxu0 0.0
  %463 = vmatpush1.msra.mxu0 0.0
  %464 = vmatprep.subr.mxu0 0.0
  %465 = vmatpush1.msra.mxu0 0.0
  %466 = vmatprep.subr.mxu0 0.0
  %467 = vmatpush1.msra.mxu0 0.0
  %468 = vmatprep.subr.mxu0 0.0
  %469 = vmatpush1.msra.mxu0 0.0
  %470 = vmatprep.subr.mxu0 0.0
  %471 = vmatpush1.msra.mxu0 0.0
  %472 = vmatprep.subr.mxu0 0.0
  %473 = vmatpush1.msra.mxu0 0.0
  %474 = vmatprep.subr.mxu0 0.0
  %475 = vmatpush1.msra.mxu0 0.0
  %476 = vmatprep.subr.mxu0 0.0
  %477 = vmatpush1.msra.mxu0 0.0
  %478 = vmatprep.subr.mxu0 0.0
  %479 = vmatpush1.msra.mxu0 0.0
  %480 = vmatprep.subr.mxu0 0.0
  %481 = vmatpush1.msra.mxu0 0.0
  %482 = vmatprep.subr.mxu0 0.0
  %483 = vmatpush1.msra.mxu0 0.0
  %484 = vmatprep.subr.mxu0 0.0
  %485 = vmatpush1.msra.mxu0 0.0
  %486 = vmatprep.subr.mxu0 0.0
  %487 = vmatpush1.msra.mxu0 0.0
  %488 = vmatprep.subr.mxu0 0.0
  %489 = vmatpush1.msra.mxu0 0.0
  %490 = vmatprep.subr.mxu0 0.0
  %491 = vmatpush1.msra.mxu0 0.0
  %492 = vmatprep.subr.mxu0 0.0
  %493 = vmatpush1.msra.mxu0 0.0
  %494 = vmatprep.subr.mxu0 0.0
  %495 = vmatpush1.msra.mxu0 0.0
  %496 = vmatprep.subr.mxu0 0.0
  %497 = vmatpush1.msra.mxu0 0.0
  %498 = vmatprep.subr.mxu0 0.0
  %499 = vmatpush1.msra.mxu0 0.0
  %500 = vmatprep.subr.mxu0 0.0
  %501 = vmatpush1.msra.mxu0 0.0
  %502 = vmatprep.subr.mxu0 0.0
  %503 = vmatpush1.msra.mxu0 0.0
  %504 = vmatprep.subr.mxu0 0.0
  %505 = vmatpush1.msra.mxu0 0.0
  %506 = vmatprep.subr.mxu0 0.0
  %507 = vmatpush1.msra.mxu0 0.0
  %508 = vmatprep.subr.mxu0 0.0
  %509 = vmatpush1.msra.mxu0 0.0
  %510 = vmatprep.subr.mxu0 0.0
  %511 = vmatpush1.msra.mxu0 0.0
  %512 = vmatprep.subr.mxu0 0.0
  %513 = vmatpush1.msra.mxu0 0.0
  %514 = vmatprep.subr.mxu0 0.0
  %515 = vmatpush1.msra.mxu0 0.0
  %516 = vmatprep.mubr.f32.mxu0 0.0
  %517 = vmatmul.mubr.f32.gmra.mrb[0].mxu0 %v450
  %v518 = vpop.f32.mrb[0].mxu0
  %v519 = vadd.f32 0.0, %v518
  %v520 = vpop.f32.mrb[0].mxu0
  %521 = vdwg.mxu0
  %s522 = scalar_lea.vmem %s4, 64
  %v523 = vld [vmem:[%s522] sm:$0xff]
  %v524 = vld [vmem:[%s522 + $0x8] sm:$0xff]
  %v525 = vld [vmem:[%s522 + $0x10] sm:$0xff]
  %v526 = vld [vmem:[%s522 + $0x18] sm:$0xff]
  %v528 = vsel %vm143, %v519, 0
  %530 = vmatprep.subr.mxu0 0.0
  %531 = vmatpush1.msra.mxu0 %v523
  %532 = vmatprep.subr.mxu0 0.0
  %533 = vmatpush1.msra.mxu0 %v524
  %534 = vmatprep.subr.mxu0 0.0
  %535 = vmatpush1.msra.mxu0 %v525
  %536 = vmatprep.subr.mxu0 0.0
  %537 = vmatpush1.msra.mxu0 %v526
  %538 = vmatprep.subr.mxu0 0.0
  %539 = vmatpush1.msra.mxu0 0.0
  %540 = vmatprep.subr.mxu0 0.0
  %541 = vmatpush1.msra.mxu0 0.0
  %542 = vmatprep.subr.mxu0 0.0
  %543 = vmatpush1.msra.mxu0 0.0
  %544 = vmatprep.subr.mxu0 0.0
  %545 = vmatpush1.msra.mxu0 0.0
  %546 = vmatprep.subr.mxu0 0.0
  %547 = vmatpush1.msra.mxu0 0.0
  %548 = vmatprep.subr.mxu0 0.0
  %549 = vmatpush1.msra.mxu0 0.0
  %550 = vmatprep.subr.mxu0 0.0
  %551 = vmatpush1.msra.mxu0 0.0
  %552 = vmatprep.subr.mxu0 0.0
  %553 = vmatpush1.msra.mxu0 0.0
  %554 = vmatprep.subr.mxu0 0.0
  %555 = vmatpush1.msra.mxu0 0.0
  %556 = vmatprep.subr.mxu0 0.0
  %557 = vmatpush1.msra.mxu0 0.0
  %558 = vmatprep.subr.mxu0 0.0
  %559 = vmatpush1.msra.mxu0 0.0
  %560 = vmatprep.subr.mxu0 0.0
  %561 = vmatpush1.msra.mxu0 0.0
  %562 = vmatprep.subr.mxu0 0.0
  %563 = vmatpush1.msra.mxu0 0.0
  %564 = vmatprep.subr.mxu0 0.0
  %565 = vmatpush1.msra.mxu0 0.0
  %566 = vmatprep.subr.mxu0 0.0
  %567 = vmatpush1.msra.mxu0 0.0
  %568 = vmatprep.subr.mxu0 0.0
  %569 = vmatpush1.msra.mxu0 0.0
  %570 = vmatprep.subr.mxu0 0.0
  %571 = vmatpush1.msra.mxu0 0.0
  %572 = vmatprep.subr.mxu0 0.0
  %573 = vmatpush1.msra.mxu0 0.0
  %574 = vmatprep.subr.mxu0 0.0
  %575 = vmatpush1.msra.mxu0 0.0
  %576 = vmatprep.subr.mxu0 0.0
  %577 = vmatpush1.msra.mxu0 0.0
  %578 = vmatprep.subr.mxu0 0.0
  %579 = vmatpush1.msra.mxu0 0.0
  %580 = vmatprep.subr.mxu0 0.0
  %581 = vmatpush1.msra.mxu0 0.0
  %582 = vmatprep.subr.mxu0 0.0
  %583 = vmatpush1.msra.mxu0 0.0
  %584 = vmatprep.subr.mxu0 0.0
  %585 = vmatpush1.msra.mxu0 0.0
  %586 = vmatprep.subr.mxu0 0.0
  %587 = vmatpush1.msra.mxu0 0.0
  %588 = vmatprep.subr.mxu0 0.0
  %589 = vmatpush1.msra.mxu0 0.0
  %590 = vmatprep.subr.mxu0 0.0
  %591 = vmatpush1.msra.mxu0 0.0
  %592 = vmatprep.subr.mxu0 0.0
  %593 = vmatpush1.msra.mxu0 0.0
  %594 = vmatprep.mubr.f32.mxu0 0.0
  %595 = vmatmul.mubr.f32.gmra.mrb[0].mxu0 %v528
  %v596 = vpop.f32.mrb[0].mxu0
  %v597 = vadd.f32 0.0, %v596
  %v598 = vpop.f32.mrb[0].mxu0
  %599 = vdwg.mxu0
  %v600 = vadd.f32 %v444, %v597
  %s601 = scalar_lea.vmem %s3, 24
  %v602 = vld [vmem:[%s601] sm:$0xff]
  %v604 = vsel %vm143, %v602, 0
  %606 = vmatprep.subr.mxu0 0.0
  %607 = vmatpush1.msra.mxu0 %v138
  %608 = vmatprep.subr.mxu0 0.0
  %609 = vmatpush1.msra.mxu0 %v139
  %610 = vmatprep.subr.mxu0 0.0
  %611 = vmatpush1.msra.mxu0 %v140
  %612 = vmatprep.subr.mxu0 0.0
  %613 = vmatpush1.msra.mxu0 %v141
  %614 = vmatprep.subr.mxu0 0.0
  %615 = vmatpush1.msra.mxu0 0.0
  %616 = vmatprep.subr.mxu0 0.0
  %617 = vmatpush1.msra.mxu0 0.0
  %618 = vmatprep.subr.mxu0 0.0
  %619 = vmatpush1.msra.mxu0 0.0
  %620 = vmatprep.subr.mxu0 0.0
  %621 = vmatpush1.msra.mxu0 0.0
  %622 = vmatprep.subr.mxu0 0.0
  %623 = vmatpush1.msra.mxu0 0.0
  %624 = vmatprep.subr.mxu0 0.0
  %625 = vmatpush1.msra.mxu0 0.0
  %626 = vmatprep.subr.mxu0 0.0
  %627 = vmatpush1.msra.mxu0 0.0
  %628 = vmatprep.subr.mxu0 0.0
  %629 = vmatpush1.msra.mxu0 0.0
  %630 = vmatprep.subr.mxu0 0.0
  %631 = vmatpush1.msra.mxu0 0.0
  %632 = vmatprep.subr.mxu0 0.0
  %633 = vmatpush1.msra.mxu0 0.0
  %634 = vmatprep.subr.mxu0 0.0
  %635 = vmatpush1.msra.mxu0 0.0
  %636 = vmatprep.subr.mxu0 0.0
  %637 = vmatpush1.msra.mxu0 0.0
  %638 = vmatprep.subr.mxu0 0.0
  %639 = vmatpush1.msra.mxu0 0.0
  %640 = vmatprep.subr.mxu0 0.0
  %641 = vmatpush1.msra.mxu0 0.0
  %642 = vmatprep.subr.mxu0 0.0
  %643 = vmatpush1.msra.mxu0 0.0
  %644 = vmatprep.subr.mxu0 0.0
  %645 = vmatpush1.msra.mxu0 0.0
  %646 = vmatprep.subr.mxu0 0.0
  %647 = vmatpush1.msra.mxu0 0.0
  %648 = vmatprep.subr.mxu0 0.0
  %649 = vmatpush1.msra.mxu0 0.0
  %650 = vmatprep.subr.mxu0 0.0
  %651 = vmatpush1.msra.mxu0 0.0
  %652 = vmatprep.subr.mxu0 0.0
  %653 = vmatpush1.msra.mxu0 0.0
  %654 = vmatprep.subr.mxu0 0.0
  %655 = vmatpush1.msra.mxu0 0.0
  %656 = vmatprep.subr.mxu0 0.0
  %657 = vmatpush1.msra.mxu0 0.0
  %658 = vmatprep.subr.mxu0 0.0
  %659 = vmatpush1.msra.mxu0 0.0
  %660 = vmatprep.subr.mxu0 0.0
  %661 = vmatpush1.msra.mxu0 0.0
  %662 = vmatprep.subr.mxu0 0.0
  %663 = vmatpush1.msra.mxu0 0.0
  %664 = vmatprep.subr.mxu0 0.0
  %665 = vmatpush1.msra.mxu0 0.0
  %666 = vmatprep.subr.mxu0 0.0
  %667 = vmatpush1.msra.mxu0 0.0
  %668 = vmatprep.subr.mxu0 0.0
  %669 = vmatpush1.msra.mxu0 0.0
  %670 = vmatprep.mubr.f32.mxu0 0.0
  %671 = vmatmul.mubr.f32.gmra.mrb[0].mxu0 %v604
  %v672 = vpop.f32.mrb[0].mxu0
  %v673 = vadd.f32 0.0, %v672
  %v674 = vpop.f32.mrb[0].mxu0
  %675 = vdwg.mxu0
  %s676 = scalar_lea.vmem %s4, 96
  %v677 = vld [vmem:[%s676] sm:$0xff]
  %v678 = vld [vmem:[%s676 + $0x8] sm:$0xff]
  %v679 = vld [vmem:[%s676 + $0x10] sm:$0xff]
  %v680 = vld [vmem:[%s676 + $0x18] sm:$0xff]
  %v682 = vsel %vm143, %v673, 0
  %684 = vmatprep.subr.mxu0 0.0
  %685 = vmatpush1.msra.mxu0 %v677
  %686 = vmatprep.subr.mxu0 0.0
  %687 = vmatpush1.msra.mxu0 %v678
  %688 = vmatprep.subr.mxu0 0.0
  %689 = vmatpush1.msra.mxu0 %v679
  %690 = vmatprep.subr.mxu0 0.0
  %691 = vmatpush1.msra.mxu0 %v680
  %692 = vmatprep.subr.mxu0 0.0
  %693 = vmatpush1.msra.mxu0 0.0
  %694 = vmatprep.subr.mxu0 0.0
  %695 = vmatpush1.msra.mxu0 0.0
  %696 = vmatprep.subr.mxu0 0.0
  %697 = vmatpush1.msra.mxu0 0.0
  %698 = vmatprep.subr.mxu0 0.0
  %699 = vmatpush1.msra.mxu0 0.0
  %700 = vmatprep.subr.mxu0 0.0
  %701 = vmatpush1.msra.mxu0 0.0
  %702 = vmatprep.subr.mxu0 0.0
  %703 = vmatpush1.msra.mxu0 0.0
  %704 = vmatprep.subr.mxu0 0.0
  %705 = vmatpush1.msra.mxu0 0.0
  %706 = vmatprep.subr.mxu0 0.0
  %707 = vmatpush1.msra.mxu0 0.0
  %708 = vmatprep.subr.mxu0 0.0
  %709 = vmatpush1.msra.mxu0 0.0
  %710 = vmatprep.subr.mxu0 0.0
  %711 = vmatpush1.msra.mxu0 0.0
  %712 = vmatprep.subr.mxu0 0.0
  %713 = vmatpush1.msra.mxu0 0.0
  %714 = vmatprep.subr.mxu0 0.0
  %715 = vmatpush1.msra.mxu0 0.0
  %716 = vmatprep.subr.mxu0 0.0
  %717 = vmatpush1.msra.mxu0 0.0
  %718 = vmatprep.subr.mxu0 0.0
  %719 = vmatpush1.msra.mxu0 0.0
  %720 = vmatprep.subr.mxu0 0.0
  %721 = vmatpush1.msra.mxu0 0.0
  %722 = vmatprep.subr.mxu0 0.0
  %723 = vmatpush1.msra.mxu0 0.0
  %724 = vmatprep.subr.mxu0 0.0
  %725 = vmatpush1.msra.mxu0 0.0
  %726 = vmatprep.subr.mxu0 0.0
  %727 = vmatpush1.msra.mxu0 0.0
  %728 = vmatprep.subr.mxu0 0.0
  %729 = vmatpush1.msra.mxu0 0.0
  %730 = vmatprep.subr.mxu0 0.0
  %731 = vmatpush1.msra.mxu0 0.0
  %732 = vmatprep.subr.mxu0 0.0
  %733 = vmatpush1.msra.mxu0 0.0
  %734 = vmatprep.subr.mxu0 0.0
  %735 = vmatpush1.msra.mxu0 0.0
  %736 = vmatprep.subr.mxu0 0.0
  %737 = vmatpush1.msra.mxu0 0.0
  %738 = vmatprep.subr.mxu0 0.0
  %739 = vmatpush1.msra.mxu0 0.0
  %740 = vmatprep.subr.mxu0 0.0
  %741 = vmatpush1.msra.mxu0 0.0
  %742 = vmatprep.subr.mxu0 0.0
  %743 = vmatpush1.msra.mxu0 0.0
  %744 = vmatprep.subr.mxu0 0.0
  %745 = vmatpush1.msra.mxu0 0.0
  %746 = vmatprep.subr.mxu0 0.0
  %747 = vmatpush1.msra.mxu0 0.0
  %748 = vmatprep.mubr.f32.mxu0 0.0
  %749 = vmatmul.mubr.f32.gmra.mrb[0].mxu0 %v682
  %v750 = vpop.f32.mrb[0].mxu0
  %v751 = vadd.f32 0.0, %v750
  %v752 = vpop.f32.mrb[0].mxu0
  %753 = vdwg.mxu0
  %v754 = vadd.f32 %v600, %v751
  %s755 = scalar_lea.vmem %s3, 32
  %v756 = vld [vmem:[%s755] sm:$0xff]
  %v758 = vsel %vm143, %v756, 0
  %760 = vmatprep.subr.mxu0 0.0
  %761 = vmatpush1.msra.mxu0 %v138
  %762 = vmatprep.subr.mxu0 0.0
  %763 = vmatpush1.msra.mxu0 %v139
  %764 = vmatprep.subr.mxu0 0.0
  %765 = vmatpush1.msra.mxu0 %v140
  %766 = vmatprep.subr.mxu0 0.0
  %767 = vmatpush1.msra.mxu0 %v141
  %768 = vmatprep.subr.mxu0 0.0
  %769 = vmatpush1.msra.mxu0 0.0
  %770 = vmatprep.subr.mxu0 0.0
  %771 = vmatpush1.msra.mxu0 0.0
  %772 = vmatprep.subr.mxu0 0.0
  %773 = vmatpush1.msra.mxu0 0.0
  %774 = vmatprep.subr.mxu0 0.0
  %775 = vmatpush1.msra.mxu0 0.0
  %776 = vmatprep.subr.mxu0 0.0
  %777 = vmatpush1.msra.mxu0 0.0
  %778 = vmatprep.subr.mxu0 0.0
  %779 = vmatpush1.msra.mxu0 0.0
  %780 = vmatprep.subr.mxu0 0.0
  %781 = vmatpush1.msra.mxu0 0.0
  %782 = vmatprep.subr.mxu0 0.0
  %783 = vmatpush1.msra.mxu0 0.0
  %784 = vmatprep.subr.mxu0 0.0
  %785 = vmatpush1.msra.mxu0 0.0
  %786 = vmatprep.subr.mxu0 0.0
  %787 = vmatpush1.msra.mxu0 0.0
  %788 = vmatprep.subr.mxu0 0.0
  %789 = vmatpush1.msra.mxu0 0.0
  %790 = vmatprep.subr.mxu0 0.0
  %791 = vmatpush1.msra.mxu0 0.0
  %792 = vmatprep.subr.mxu0 0.0
  %793 = vmatpush1.msra.mxu0 0.0
  %794 = vmatprep.subr.mxu0 0.0
  %795 = vmatpush1.msra.mxu0 0.0
  %796 = vmatprep.subr.mxu0 0.0
  %797 = vmatpush1.msra.mxu0 0.0
  %798 = vmatprep.subr.mxu0 0.0
  %799 = vmatpush1.msra.mxu0 0.0
  %800 = vmatprep.subr.mxu0 0.0
  %801 = vmatpush1.msra.mxu0 0.0
  %802 = vmatprep.subr.mxu0 0.0
  %803 = vmatpush1.msra.mxu0 0.0
  %804 = vmatprep.subr.mxu0 0.0
  %805 = vmatpush1.msra.mxu0 0.0
  %806 = vmatprep.subr.mxu0 0.0
  %807 = vmatpush1.msra.mxu0 0.0
  %808 = vmatprep.subr.mxu0 0.0
  %809 = vmatpush1.msra.mxu0 0.0
  %810 = vmatprep.subr.mxu0 0.0
  %811 = vmatpush1.msra.mxu0 0.0
  %812 = vmatprep.subr.mxu0 0.0
  %813 = vmatpush1.msra.mxu0 0.0
  %814 = vmatprep.subr.mxu0 0.0
  %815 = vmatpush1.msra.mxu0 0.0
  %816 = vmatprep.subr.mxu0 0.0
  %817 = vmatpush1.msra.mxu0 0.0
  %818 = vmatprep.subr.mxu0 0.0
  %819 = vmatpush1.msra.mxu0 0.0
  %820 = vmatprep.subr.mxu0 0.0
  %821 = vmatpush1.msra.mxu0 0.0
  %822 = vmatprep.subr.mxu0 0.0
  %823 = vmatpush1.msra.mxu0 0.0
  %824 = vmatprep.mubr.f32.mxu0 0.0
  %825 = vmatmul.mubr.f32.gmra.mrb[0].mxu0 %v758
  %v826 = vpop.f32.mrb[0].mxu0
  %v827 = vadd.f32 0.0, %v826
  %v828 = vpop.f32.mrb[0].mxu0
  %829 = vdwg.mxu0
  %s830 = scalar_lea.vmem %s4, 128
  %v831 = vld [vmem:[%s830] sm:$0xff]
  %v832 = vld [vmem:[%s830 + $0x8] sm:$0xff]
  %v833 = vld [vmem:[%s830 + $0x10] sm:$0xff]
  %v834 = vld [vmem:[%s830 + $0x18] sm:$0xff]
  %v836 = vsel %vm143, %v827, 0
  %838 = vmatprep.subr.mxu0 0.0
  %839 = vmatpush1.msra.mxu0 %v831
  %840 = vmatprep.subr.mxu0 0.0
  %841 = vmatpush1.msra.mxu0 %v832
  %842 = vmatprep.subr.mxu0 0.0
  %843 = vmatpush1.msra.mxu0 %v833
  %844 = vmatprep.subr.mxu0 0.0
  %845 = vmatpush1.msra.mxu0 %v834
  %846 = vmatprep.subr.mxu0 0.0
  %847 = vmatpush1.msra.mxu0 0.0
  %848 = vmatprep.subr.mxu0 0.0
  %849 = vmatpush1.msra.mxu0 0.0
  %850 = vmatprep.subr.mxu0 0.0
  %851 = vmatpush1.msra.mxu0 0.0
  %852 = vmatprep.subr.mxu0 0.0
  %853 = vmatpush1.msra.mxu0 0.0
  %854 = vmatprep.subr.mxu0 0.0
  %855 = vmatpush1.msra.mxu0 0.0
  %856 = vmatprep.subr.mxu0 0.0
  %857 = vmatpush1.msra.mxu0 0.0
  %858 = vmatprep.subr.mxu0 0.0
  %859 = vmatpush1.msra.mxu0 0.0
  %860 = vmatprep.subr.mxu0 0.0
  %861 = vmatpush1.msra.mxu0 0.0
  %862 = vmatprep.subr.mxu0 0.0
  %863 = vmatpush1.msra.mxu0 0.0
  %864 = vmatprep.subr.mxu0 0.0
  %865 = vmatpush1.msra.mxu0 0.0
  %866 = vmatprep.subr.mxu0 0.0
  %867 = vmatpush1.msra.mxu0 0.0
  %868 = vmatprep.subr.mxu0 0.0
  %869 = vmatpush1.msra.mxu0 0.0
  %870 = vmatprep.subr.mxu0 0.0
  %871 = vmatpush1.msra.mxu0 0.0
  %872 = vmatprep.subr.mxu0 0.0
  %873 = vmatpush1.msra.mxu0 0.0
  %874 = vmatprep.subr.mxu0 0.0
  %875 = vmatpush1.msra.mxu0 0.0
  %876 = vmatprep.subr.mxu0 0.0
  %877 = vmatpush1.msra.mxu0 0.0
  %878 = vmatprep.subr.mxu0 0.0
  %879 = vmatpush1.msra.mxu0 0.0
  %880 = vmatprep.subr.mxu0 0.0
  %881 = vmatpush1.msra.mxu0 0.0
  %882 = vmatprep.subr.mxu0 0.0
  %883 = vmatpush1.msra.mxu0 0.0
  %884 = vmatprep.subr.mxu0 0.0
  %885 = vmatpush1.msra.mxu0 0.0
  %886 = vmatprep.subr.mxu0 0.0
  %887 = vmatpush1.msra.mxu0 0.0
  %888 = vmatprep.subr.mxu0 0.0
  %889 = vmatpush1.msra.mxu0 0.0
  %890 = vmatprep.subr.mxu0 0.0
  %891 = vmatpush1.msra.mxu0 0.0
  %892 = vmatprep.subr.mxu0 0.0
  %893 = vmatpush1.msra.mxu0 0.0
  %894 = vmatprep.subr.mxu0 0.0
  %895 = vmatpush1.msra.mxu0 0.0
  %896 = vmatprep.subr.mxu0 0.0
  %897 = vmatpush1.msra.mxu0 0.0
  %898 = vmatprep.subr.mxu0 0.0
  %899 = vmatpush1.msra.mxu0 0.0
  %900 = vmatprep.subr.mxu0 0.0
  %901 = vmatpush1.msra.mxu0 0.0
  %902 = vmatprep.mubr.f32.mxu0 0.0
  %903 = vmatmul.mubr.f32.gmra.mrb[0].mxu0 %v836
  %v904 = vpop.f32.mrb[0].mxu0
  %v905 = vadd.f32 0.0, %v904
  %v906 = vpop.f32.mrb[0].mxu0
  %907 = vdwg.mxu0
  %v908 = vadd.f32 %v754, %v905
  %s909 = scalar_lea.vmem %s3, 40
  %v910 = vld [vmem:[%s909] sm:$0xff]
  %v912 = vsel %vm143, %v910, 0
  %914 = vmatprep.subr.mxu0 0.0
  %915 = vmatpush1.msra.mxu0 %v138
  %916 = vmatprep.subr.mxu0 0.0
  %917 = vmatpush1.msra.mxu0 %v139
  %918 = vmatprep.subr.mxu0 0.0
  %919 = vmatpush1.msra.mxu0 %v140
  %920 = vmatprep.subr.mxu0 0.0
  %921 = vmatpush1.msra.mxu0 %v141
  %922 = vmatprep.subr.mxu0 0.0
  %923 = vmatpush1.msra.mxu0 0.0
  %924 = vmatprep.subr.mxu0 0.0
  %925 = vmatpush1.msra.mxu0 0.0
  %926 = vmatprep.subr.mxu0 0.0
  %927 = vmatpush1.msra.mxu0 0.0
  %928 = vmatprep.subr.mxu0 0.0
  %929 = vmatpush1.msra.mxu0 0.0
  %930 = vmatprep.subr.mxu0 0.0
  %931 = vmatpush1.msra.mxu0 0.0
  %932 = vmatprep.subr.mxu0 0.0
  %933 = vmatpush1.msra.mxu0 0.0
  %934 = vmatprep.subr.mxu0 0.0
  %935 = vmatpush1.msra.mxu0 0.0
  %936 = vmatprep.subr.mxu0 0.0
  %937 = vmatpush1.msra.mxu0 0.0
  %938 = vmatprep.subr.mxu0 0.0
  %939 = vmatpush1.msra.mxu0 0.0
  %940 = vmatprep.subr.mxu0 0.0
  %941 = vmatpush1.msra.mxu0 0.0
  %942 = vmatprep.subr.mxu0 0.0
  %943 = vmatpush1.msra.mxu0 0.0
  %944 = vmatprep.subr.mxu0 0.0
  %945 = vmatpush1.msra.mxu0 0.0
  %946 = vmatprep.subr.mxu0 0.0
  %947 = vmatpush1.msra.mxu0 0.0
  %948 = vmatprep.subr.mxu0 0.0
  %949 = vmatpush1.msra.mxu0 0.0
  %950 = vmatprep.subr.mxu0 0.0
  %951 = vmatpush1.msra.mxu0 0.0
  %952 = vmatprep.subr.mxu0 0.0
  %953 = vmatpush1.msra.mxu0 0.0
  %954 = vmatprep.subr.mxu0 0.0
  %955 = vmatpush1.msra.mxu0 0.0
  %956 = vmatprep.subr.mxu0 0.0
  %957 = vmatpush1.msra.mxu0 0.0
  %958 = vmatprep.subr.mxu0 0.0
  %959 = vmatpush1.msra.mxu0 0.0
  %960 = vmatprep.subr.mxu0 0.0
  %961 = vmatpush1.msra.mxu0 0.0
  %962 = vmatprep.subr.mxu0 0.0
  %963 = vmatpush1.msra.mxu0 0.0
  %964 = vmatprep.subr.mxu0 0.0
  %965 = vmatpush1.msra.mxu0 0.0
  %966 = vmatprep.subr.mxu0 0.0
  %967 = vmatpush1.msra.mxu0 0.0
  %968 = vmatprep.subr.mxu0 0.0
  %969 = vmatpush1.msra.mxu0 0.0
  %970 = vmatprep.subr.mxu0 0.0
  %971 = vmatpush1.msra.mxu0 0.0
  %972 = vmatprep.subr.mxu0 0.0
  %973 = vmatpush1.msra.mxu0 0.0
  %974 = vmatprep.subr.mxu0 0.0
  %975 = vmatpush1.msra.mxu0 0.0
  %976 = vmatprep.subr.mxu0 0.0
  %977 = vmatpush1.msra.mxu0 0.0
  %978 = vmatprep.mubr.f32.mxu0 0.0
  %979 = vmatmul.mubr.f32.gmra.mrb[0].mxu0 %v912
  %v980 = vpop.f32.mrb[0].mxu0
  %v981 = vadd.f32 0.0, %v980
  %v982 = vpop.f32.mrb[0].mxu0
  %983 = vdwg.mxu0
  %s984 = scalar_lea.vmem %s4, 160
  %v985 = vld [vmem:[%s984] sm:$0xff]
  %v986 = vld [vmem:[%s984 + $0x8] sm:$0xff]
  %v987 = vld [vmem:[%s984 + $0x10] sm:$0xff]
  %v988 = vld [vmem:[%s984 + $0x18] sm:$0xff]
  %v990 = vsel %vm143, %v981, 0
  %992 = vmatprep.subr.mxu0 0.0
  %993 = vmatpush1.msra.mxu0 %v985
  %994 = vmatprep.subr.mxu0 0.0
  %995 = vmatpush1.msra.mxu0 %v986
  %996 = vmatprep.subr.mxu0 0.0
  %997 = vmatpush1.msra.mxu0 %v987
  %998 = vmatprep.subr.mxu0 0.0
  %999 = vmatpush1.msra.mxu0 %v988
  %1000 = vmatprep.subr.mxu0 0.0
  %1001 = vmatpush1.msra.mxu0 0.0
  %1002 = vmatprep.subr.mxu0 0.0
  %1003 = vmatpush1.msra.mxu0 0.0
  %1004 = vmatprep.subr.mxu0 0.0
  %1005 = vmatpush1.msra.mxu0 0.0
  %1006 = vmatprep.subr.mxu0 0.0
  %1007 = vmatpush1.msra.mxu0 0.0
  %1008 = vmatprep.subr.mxu0 0.0
  %1009 = vmatpush1.msra.mxu0 0.0
  %1010 = vmatprep.subr.mxu0 0.0
  %1011 = vmatpush1.msra.mxu0 0.0
  %1012 = vmatprep.subr.mxu0 0.0
  %1013 = vmatpush1.msra.mxu0 0.0
  %1014 = vmatprep.subr.mxu0 0.0
  %1015 = vmatpush1.msra.mxu0 0.0
  %1016 = vmatprep.subr.mxu0 0.0
  %1017 = vmatpush1.msra.mxu0 0.0
  %1018 = vmatprep.subr.mxu0 0.0
  %1019 = vmatpush1.msra.mxu0 0.0
  %1020 = vmatprep.subr.mxu0 0.0
  %1021 = vmatpush1.msra.mxu0 0.0
  %1022 = vmatprep.subr.mxu0 0.0
  %1023 = vmatpush1.msra.mxu0 0.0
  %1024 = vmatprep.subr.mxu0 0.0
  %1025 = vmatpush1.msra.mxu0 0.0
  %1026 = vmatprep.subr.mxu0 0.0
  %1027 = vmatpush1.msra.mxu0 0.0
  %1028 = vmatprep.subr.mxu0 0.0
  %1029 = vmatpush1.msra.mxu0 0.0
  %1030 = vmatprep.subr.mxu0 0.0
  %1031 = vmatpush1.msra.mxu0 0.0
  %1032 = vmatprep.subr.mxu0 0.0
  %1033 = vmatpush1.msra.mxu0 0.0
  %1034 = vmatprep.subr.mxu0 0.0
  %1035 = vmatpush1.msra.mxu0 0.0
  %1036 = vmatprep.subr.mxu0 0.0
  %1037 = vmatpush1.msra.mxu0 0.0
  %1038 = vmatprep.subr.mxu0 0.0
  %1039 = vmatpush1.msra.mxu0 0.0
  %1040 = vmatprep.subr.mxu0 0.0
  %1041 = vmatpush1.msra.mxu0 0.0
  %1042 = vmatprep.subr.mxu0 0.0
  %1043 = vmatpush1.msra.mxu0 0.0
  %1044 = vmatprep.subr.mxu0 0.0
  %1045 = vmatpush1.msra.mxu0 0.0
  %1046 = vmatprep.subr.mxu0 0.0
  %1047 = vmatpush1.msra.mxu0 0.0
  %1048 = vmatprep.subr.mxu0 0.0
  %1049 = vmatpush1.msra.mxu0 0.0
  %1050 = vmatprep.subr.mxu0 0.0
  %1051 = vmatpush1.msra.mxu0 0.0
  %1052 = vmatprep.subr.mxu0 0.0
  %1053 = vmatpush1.msra.mxu0 0.0
  %1054 = vmatprep.subr.mxu0 0.0
  %1055 = vmatpush1.msra.mxu0 0.0
  %1056 = vmatprep.mubr.f32.mxu0 0.0
  %1057 = vmatmul.mubr.f32.gmra.mrb[0].mxu0 %v990
  %v1058 = vpop.f32.mrb[0].mxu0
  %v1059 = vadd.f32 0.0, %v1058
  %v1060 = vpop.f32.mrb[0].mxu0
  %1061 = vdwg.mxu0
  %v1062 = vadd.f32 %v908, %v1059
  %s1063 = scalar_lea.vmem %s3, 48
  %v1064 = vld [vmem:[%s1063] sm:$0xff]
  %v1066 = vsel %vm143, %v1064, 0
  %1068 = vmatprep.subr.mxu0 0.0
  %1069 = vmatpush1.msra.mxu0 %v138
  %1070 = vmatprep.subr.mxu0 0.0
  %1071 = vmatpush1.msra.mxu0 %v139
  %1072 = vmatprep.subr.mxu0 0.0
  %1073 = vmatpush1.msra.mxu0 %v140
  %1074 = vmatprep.subr.mxu0 0.0
  %1075 = vmatpush1.msra.mxu0 %v141
  %1076 = vmatprep.subr.mxu0 0.0
  %1077 = vmatpush1.msra.mxu0 0.0
  %1078 = vmatprep.subr.mxu0 0.0
  %1079 = vmatpush1.msra.mxu0 0.0
  %1080 = vmatprep.subr.mxu0 0.0
  %1081 = vmatpush1.msra.mxu0 0.0
  %1082 = vmatprep.subr.mxu0 0.0
  %1083 = vmatpush1.msra.mxu0 0.0
  %1084 = vmatprep.subr.mxu0 0.0
  %1085 = vmatpush1.msra.mxu0 0.0
  %1086 = vmatprep.subr.mxu0 0.0
  %1087 = vmatpush1.msra.mxu0 0.0
  %1088 = vmatprep.subr.mxu0 0.0
  %1089 = vmatpush1.msra.mxu0 0.0
  %1090 = vmatprep.subr.mxu0 0.0
  %1091 = vmatpush1.msra.mxu0 0.0
  %1092 = vmatprep.subr.mxu0 0.0
  %1093 = vmatpush1.msra.mxu0 0.0
  %1094 = vmatprep.subr.mxu0 0.0
  %1095 = vmatpush1.msra.mxu0 0.0
  %1096 = vmatprep.subr.mxu0 0.0
  %1097 = vmatpush1.msra.mxu0 0.0
  %1098 = vmatprep.subr.mxu0 0.0
  %1099 = vmatpush1.msra.mxu0 0.0
  %1100 = vmatprep.subr.mxu0 0.0
  %1101 = vmatpush1.msra.mxu0 0.0
  %1102 = vmatprep.subr.mxu0 0.0
  %1103 = vmatpush1.msra.mxu0 0.0
  %1104 = vmatprep.subr.mxu0 0.0
  %1105 = vmatpush1.msra.mxu0 0.0
  %1106 = vmatprep.subr.mxu0 0.0
  %1107 = vmatpush1.msra.mxu0 0.0
  %1108 = vmatprep.subr.mxu0 0.0
  %1109 = vmatpush1.msra.mxu0 0.0
  %1110 = vmatprep.subr.mxu0 0.0
  %1111 = vmatpush1.msra.mxu0 0.0
  %1112 = vmatprep.subr.mxu0 0.0
  %1113 = vmatpush1.msra.mxu0 0.0
  %1114 = vmatprep.subr.mxu0 0.0
  %1115 = vmatpush1.msra.mxu0 0.0
  %1116 = vmatprep.subr.mxu0 0.0
  %1117 = vmatpush1.msra.mxu0 0.0
  %1118 = vmatprep.subr.mxu0 0.0
  %1119 = vmatpush1.msra.mxu0 0.0
  %1120 = vmatprep.subr.mxu0 0.0
  %1121 = vmatpush1.msra.mxu0 0.0
  %1122 = vmatprep.subr.mxu0 0.0
  %1123 = vmatpush1.msra.mxu0 0.0
  %1124 = vmatprep.subr.mxu0 0.0
  %1125 = vmatpush1.msra.mxu0 0.0
  %1126 = vmatprep.subr.mxu0 0.0
  %1127 = vmatpush1.msra.mxu0 0.0
  %1128 = vmatprep.subr.mxu0 0.0
  %1129 = vmatpush1.msra.mxu0 0.0
  %1130 = vmatprep.subr.mxu0 0.0
  %1131 = vmatpush1.msra.mxu0 0.0
  %1132 = vmatprep.mubr.f32.mxu0 0.0
  %1133 = vmatmul.mubr.f32.gmra.mrb[0].mxu0 %v1066
  %v1134 = vpop.f32.mrb[0].mxu0
  %v1135 = vadd.f32 0.0, %v1134
  %v1136 = vpop.f32.mrb[0].mxu0
  %1137 = vdwg.mxu0
  %s1138 = scalar_lea.vmem %s4, 192
  %v1139 = vld [vmem:[%s1138] sm:$0xff]
  %v1140 = vld [vmem:[%s1138 + $0x8] sm:$0xff]
  %v1141 = vld [vmem:[%s1138 + $0x10] sm:$0xff]
  %v1142 = vld [vmem:[%s1138 + $0x18] sm:$0xff]
  %v1144 = vsel %vm143, %v1135, 0
  %1146 = vmatprep.subr.mxu0 0.0
  %1147 = vmatpush1.msra.mxu0 %v1139
  %1148 = vmatprep.subr.mxu0 0.0
  %1149 = vmatpush1.msra.mxu0 %v1140
  %1150 = vmatprep.subr.mxu0 0.0
  %1151 = vmatpush1.msra.mxu0 %v1141
  %1152 = vmatprep.subr.mxu0 0.0
  %1153 = vmatpush1.msra.mxu0 %v1142
  %1154 = vmatprep.subr.mxu0 0.0
  %1155 = vmatpush1.msra.mxu0 0.0
  %1156 = vmatprep.subr.mxu0 0.0
  %1157 = vmatpush1.msra.mxu0 0.0
  %1158 = vmatprep.subr.mxu0 0.0
  %1159 = vmatpush1.msra.mxu0 0.0
  %1160 = vmatprep.subr.mxu0 0.0
  %1161 = vmatpush1.msra.mxu0 0.0
  %1162 = vmatprep.subr.mxu0 0.0
  %1163 = vmatpush1.msra.mxu0 0.0
  %1164 = vmatprep.subr.mxu0 0.0
  %1165 = vmatpush1.msra.mxu0 0.0
  %1166 = vmatprep.subr.mxu0 0.0
  %1167 = vmatpush1.msra.mxu0 0.0
  %1168 = vmatprep.subr.mxu0 0.0
  %1169 = vmatpush1.msra.mxu0 0.0
  %1170 = vmatprep.subr.mxu0 0.0
  %1171 = vmatpush1.msra.mxu0 0.0
  %1172 = vmatprep.subr.mxu0 0.0
  %1173 = vmatpush1.msra.mxu0 0.0
  %1174 = vmatprep.subr.mxu0 0.0
  %1175 = vmatpush1.msra.mxu0 0.0
  %1176 = vmatprep.subr.mxu0 0.0
  %1177 = vmatpush1.msra.mxu0 0.0
  %1178 = vmatprep.subr.mxu0 0.0
  %1179 = vmatpush1.msra.mxu0 0.0
  %1180 = vmatprep.subr.mxu0 0.0
  %1181 = vmatpush1.msra.mxu0 0.0
  %1182 = vmatprep.subr.mxu0 0.0
  %1183 = vmatpush1.msra.mxu0 0.0
  %1184 = vmatprep.subr.mxu0 0.0
  %1185 = vmatpush1.msra.mxu0 0.0
  %1186 = vmatprep.subr.mxu0 0.0
  %1187 = vmatpush1.msra.mxu0 0.0
  %1188 = vmatprep.subr.mxu0 0.0
  %1189 = vmatpush1.msra.mxu0 0.0
  %1190 = vmatprep.subr.mxu0 0.0
  %1191 = vmatpush1.msra.mxu0 0.0
  %1192 = vmatprep.subr.mxu0 0.0
  %1193 = vmatpush1.msra.mxu0 0.0
  %1194 = vmatprep.subr.mxu0 0.0
  %1195 = vmatpush1.msra.mxu0 0.0
  %1196 = vmatprep.subr.mxu0 0.0
  %1197 = vmatpush1.msra.mxu0 0.0
  %1198 = vmatprep.subr.mxu0 0.0
  %1199 = vmatpush1.msra.mxu0 0.0
  %1200 = vmatprep.subr.mxu0 0.0
  %1201 = vmatpush1.msra.mxu0 0.0
  %1202 = vmatprep.subr.mxu0 0.0
  %1203 = vmatpush1.msra.mxu0 0.0
  %1204 = vmatprep.subr.mxu0 0.0
  %1205 = vmatpush1.msra.mxu0 0.0
  %1206 = vmatprep.subr.mxu0 0.0
  %1207 = vmatpush1.msra.mxu0 0.0
  %1208 = vmatprep.subr.mxu0 0.0
  %1209 = vmatpush1.msra.mxu0 0.0
  %1210 = vmatprep.mubr.f32.mxu0 0.0
  %1211 = vmatmul.mubr.f32.gmra.mrb[0].mxu0 %v1144
  %v1212 = vpop.f32.mrb[0].mxu0
  %v1213 = vadd.f32 0.0, %v1212
  %v1214 = vpop.f32.mrb[0].mxu0
  %1215 = vdwg.mxu0
  %v1216 = vadd.f32 %v1062, %v1213
  %s1217 = scalar_lea.vmem %s3, 56
  %v1218 = vld [vmem:[%s1217] sm:$0xff]
  %v1220 = vsel %vm143, %v1218, 0
  %1222 = vmatprep.subr.mxu0 0.0
  %1223 = vmatpush1.msra.mxu0 %v138
  %1224 = vmatprep.subr.mxu0 0.0
  %1225 = vmatpush1.msra.mxu0 %v139
  %1226 = vmatprep.subr.mxu0 0.0
  %1227 = vmatpush1.msra.mxu0 %v140
  %1228 = vmatprep.subr.mxu0 0.0
  %1229 = vmatpush1.msra.mxu0 %v141
  %1230 = vmatprep.subr.mxu0 0.0
  %1231 = vmatpush1.msra.mxu0 0.0
  %1232 = vmatprep.subr.mxu0 0.0
  %1233 = vmatpush1.msra.mxu0 0.0
  %1234 = vmatprep.subr.mxu0 0.0
  %1235 = vmatpush1.msra.mxu0 0.0
  %1236 = vmatprep.subr.mxu0 0.0
  %1237 = vmatpush1.msra.mxu0 0.0
  %1238 = vmatprep.subr.mxu0 0.0
  %1239 = vmatpush1.msra.mxu0 0.0
  %1240 = vmatprep.subr.mxu0 0.0
  %1241 = vmatpush1.msra.mxu0 0.0
  %1242 = vmatprep.subr.mxu0 0.0
  %1243 = vmatpush1.msra.mxu0 0.0
  %1244 = vmatprep.subr.mxu0 0.0
  %1245 = vmatpush1.msra.mxu0 0.0
  %1246 = vmatprep.subr.mxu0 0.0
  %1247 = vmatpush1.msra.mxu0 0.0
  %1248 = vmatprep.subr.mxu0 0.0
  %1249 = vmatpush1.msra.mxu0 0.0
  %1250 = vmatprep.subr.mxu0 0.0
  %1251 = vmatpush1.msra.mxu0 0.0
  %1252 = vmatprep.subr.mxu0 0.0
  %1253 = vmatpush1.msra.mxu0 0.0
  %1254 = vmatprep.subr.mxu0 0.0
  %1255 = vmatpush1.msra.mxu0 0.0
  %1256 = vmatprep.subr.mxu0 0.0
  %1257 = vmatpush1.msra.mxu0 0.0
  %1258 = vmatprep.subr.mxu0 0.0
  %1259 = vmatpush1.msra.mxu0 0.0
  %1260 = vmatprep.subr.mxu0 0.0
  %1261 = vmatpush1.msra.mxu0 0.0
  %1262 = vmatprep.subr.mxu0 0.0
  %1263 = vmatpush1.msra.mxu0 0.0
  %1264 = vmatprep.subr.mxu0 0.0
  %1265 = vmatpush1.msra.mxu0 0.0
  %1266 = vmatprep.subr.mxu0 0.0
  %1267 = vmatpush1.msra.mxu0 0.0
  %1268 = vmatprep.subr.mxu0 0.0
  %1269 = vmatpush1.msra.mxu0 0.0
  %1270 = vmatprep.subr.mxu0 0.0
  %1271 = vmatpush1.msra.mxu0 0.0
  %1272 = vmatprep.subr.mxu0 0.0
  %1273 = vmatpush1.msra.mxu0 0.0
  %1274 = vmatprep.subr.mxu0 0.0
  %1275 = vmatpush1.msra.mxu0 0.0
  %1276 = vmatprep.subr.mxu0 0.0
  %1277 = vmatpush1.msra.mxu0 0.0
  %1278 = vmatprep.subr.mxu0 0.0
  %1279 = vmatpush1.msra.mxu0 0.0
  %1280 = vmatprep.subr.mxu0 0.0
  %1281 = vmatpush1.msra.mxu0 0.0
  %1282 = vmatprep.subr.mxu0 0.0
  %1283 = vmatpush1.msra.mxu0 0.0
  %1284 = vmatprep.subr.mxu0 0.0
  %1285 = vmatpush1.msra.mxu0 0.0
  %1286 = vmatprep.mubr.f32.mxu0 0.0
  %1287 = vmatmul.mubr.f32.gmra.mrb[0].mxu0 %v1220
  %v1288 = vpop.f32.mrb[0].mxu0
  %v1289 = vadd.f32 0.0, %v1288
  %v1290 = vpop.f32.mrb[0].mxu0
  %1291 = vdwg.mxu0
  %s1292 = scalar_lea.vmem %s4, 224
  %v1293 = vld [vmem:[%s1292] sm:$0xff]
  %v1294 = vld [vmem:[%s1292 + $0x8] sm:$0xff]
  %v1295 = vld [vmem:[%s1292 + $0x10] sm:$0xff]
  %v1296 = vld [vmem:[%s1292 + $0x18] sm:$0xff]
  %v1298 = vsel %vm143, %v1289, 0
  %1300 = vmatprep.subr.mxu0 0.0
  %1301 = vmatpush1.msra.mxu0 %v1293
  %1302 = vmatprep.subr.mxu0 0.0
  %1303 = vmatpush1.msra.mxu0 %v1294
  %1304 = vmatprep.subr.mxu0 0.0
  %1305 = vmatpush1.msra.mxu0 %v1295
  %1306 = vmatprep.subr.mxu0 0.0
  %1307 = vmatpush1.msra.mxu0 %v1296
  %1308 = vmatprep.subr.mxu0 0.0
  %1309 = vmatpush1.msra.mxu0 0.0
  %1310 = vmatprep.subr.mxu0 0.0
  %1311 = vmatpush1.msra.mxu0 0.0
  %1312 = vmatprep.subr.mxu0 0.0
  %1313 = vmatpush1.msra.mxu0 0.0
  %1314 = vmatprep.subr.mxu0 0.0
  %1315 = vmatpush1.msra.mxu0 0.0
  %1316 = vmatprep.subr.mxu0 0.0
  %1317 = vmatpush1.msra.mxu0 0.0
  %1318 = vmatprep.subr.mxu0 0.0
  %1319 = vmatpush1.msra.mxu0 0.0
  %1320 = vmatprep.subr.mxu0 0.0
  %1321 = vmatpush1.msra.mxu0 0.0
  %1322 = vmatprep.subr.mxu0 0.0
  %1323 = vmatpush1.msra.mxu0 0.0
  %1324 = vmatprep.subr.mxu0 0.0
  %1325 = vmatpush1.msra.mxu0 0.0
  %1326 = vmatprep.subr.mxu0 0.0
  %1327 = vmatpush1.msra.mxu0 0.0
  %1328 = vmatprep.subr.mxu0 0.0
  %1329 = vmatpush1.msra.mxu0 0.0
  %1330 = vmatprep.subr.mxu0 0.0
  %1331 = vmatpush1.msra.mxu0 0.0
  %1332 = vmatprep.subr.mxu0 0.0
  %1333 = vmatpush1.msra.mxu0 0.0
  %1334 = vmatprep.subr.mxu0 0.0
  %1335 = vmatpush1.msra.mxu0 0.0
  %1336 = vmatprep.subr.mxu0 0.0
  %1337 = vmatpush1.msra.mxu0 0.0
  %1338 = vmatprep.subr.mxu0 0.0
  %1339 = vmatpush1.msra.mxu0 0.0
  %1340 = vmatprep.subr.mxu0 0.0
  %1341 = vmatpush1.msra.mxu0 0.0
  %1342 = vmatprep.subr.mxu0 0.0
  %1343 = vmatpush1.msra.mxu0 0.0
  %1344 = vmatprep.subr.mxu0 0.0
  %1345 = vmatpush1.msra.mxu0 0.0
  %1346 = vmatprep.subr.mxu0 0.0
  %1347 = vmatpush1.msra.mxu0 0.0
  %1348 = vmatprep.subr.mxu0 0.0
  %1349 = vmatpush1.msra.mxu0 0.0
  %1350 = vmatprep.subr.mxu0 0.0
  %1351 = vmatpush1.msra.mxu0 0.0
  %1352 = vmatprep.subr.mxu0 0.0
  %1353 = vmatpush1.msra.mxu0 0.0
  %1354 = vmatprep.subr.mxu0 0.0
  %1355 = vmatpush1.msra.mxu0 0.0
  %1356 = vmatprep.subr.mxu0 0.0
  %1357 = vmatpush1.msra.mxu0 0.0
  %1358 = vmatprep.subr.mxu0 0.0
  %1359 = vmatpush1.msra.mxu0 0.0
  %1360 = vmatprep.subr.mxu0 0.0
  %1361 = vmatpush1.msra.mxu0 0.0
  %1362 = vmatprep.subr.mxu0 0.0
  %1363 = vmatpush1.msra.mxu0 0.0
  %1364 = vmatprep.mubr.f32.mxu0 0.0
  %1365 = vmatmul.mubr.f32.gmra.mrb[0].mxu0 %v1298
  %v1366 = vpop.f32.mrb[0].mxu0
  %v1367 = vadd.f32 0.0, %v1366
  %v1368 = vpop.f32.mrb[0].mxu0
  %1369 = vdwg.mxu0
  %v1370 = vadd.f32 %v1216, %v1367
  %s1371 = scalar_lea.vmem %s3, 64
  %v1372 = vld [vmem:[%s1371] sm:$0xff]
  %v1374 = vsel %vm143, %v1372, 0
  %1376 = vmatprep.subr.mxu0 0.0
  %1377 = vmatpush1.msra.mxu0 %v138
  %1378 = vmatprep.subr.mxu0 0.0
  %1379 = vmatpush1.msra.mxu0 %v139
  %1380 = vmatprep.subr.mxu0 0.0
  %1381 = vmatpush1.msra.mxu0 %v140
  %1382 = vmatprep.subr.mxu0 0.0
  %1383 = vmatpush1.msra.mxu0 %v141
  %1384 = vmatprep.subr.mxu0 0.0
  %1385 = vmatpush1.msra.mxu0 0.0
  %1386 = vmatprep.subr.mxu0 0.0
  %1387 = vmatpush1.msra.mxu0 0.0
  %1388 = vmatprep.subr.mxu0 0.0
  %1389 = vmatpush1.msra.mxu0 0.0
  %1390 = vmatprep.subr.mxu0 0.0
  %1391 = vmatpush1.msra.mxu0 0.0
  %1392 = vmatprep.subr.mxu0 0.0
  %1393 = vmatpush1.msra.mxu0 0.0
  %1394 = vmatprep.subr.mxu0 0.0
  %1395 = vmatpush1.msra.mxu0 0.0
  %1396 = vmatprep.subr.mxu0 0.0
  %1397 = vmatpush1.msra.mxu0 0.0
  %1398 = vmatprep.subr.mxu0 0.0
  %1399 = vmatpush1.msra.mxu0 0.0
  %1400 = vmatprep.subr.mxu0 0.0
  %1401 = vmatpush1.msra.mxu0 0.0
  %1402 = vmatprep.subr.mxu0 0.0
  %1403 = vmatpush1.msra.mxu0 0.0
  %1404 = vmatprep.subr.mxu0 0.0
  %1405 = vmatpush1.msra.mxu0 0.0
  %1406 = vmatprep.subr.mxu0 0.0
  %1407 = vmatpush1.msra.mxu0 0.0
  %1408 = vmatprep.subr.mxu0 0.0
  %1409 = vmatpush1.msra.mxu0 0.0
  %1410 = vmatprep.subr.mxu0 0.0
  %1411 = vmatpush1.msra.mxu0 0.0
  %1412 = vmatprep.subr.mxu0 0.0
  %1413 = vmatpush1.msra.mxu0 0.0
  %1414 = vmatprep.subr.mxu0 0.0
  %1415 = vmatpush1.msra.mxu0 0.0
  %1416 = vmatprep.subr.mxu0 0.0
  %1417 = vmatpush1.msra.mxu0 0.0
  %1418 = vmatprep.subr.mxu0 0.0
  %1419 = vmatpush1.msra.mxu0 0.0
  %1420 = vmatprep.subr.mxu0 0.0
  %1421 = vmatpush1.msra.mxu0 0.0
  %1422 = vmatprep.subr.mxu0 0.0
  %1423 = vmatpush1.msra.mxu0 0.0
  %1424 = vmatprep.subr.mxu0 0.0
  %1425 = vmatpush1.msra.mxu0 0.0
  %1426 = vmatprep.subr.mxu0 0.0
  %1427 = vmatpush1.msra.mxu0 0.0
  %1428 = vmatprep.subr.mxu0 0.0
  %1429 = vmatpush1.msra.mxu0 0.0
  %1430 = vmatprep.subr.mxu0 0.0
  %1431 = vmatpush1.msra.mxu0 0.0
  %1432 = vmatprep.subr.mxu0 0.0
  %1433 = vmatpush1.msra.mxu0 0.0
  %1434 = vmatprep.subr.mxu0 0.0
  %1435 = vmatpush1.msra.mxu0 0.0
  %1436 = vmatprep.subr.mxu0 0.0
  %1437 = vmatpush1.msra.mxu0 0.0
  %1438 = vmatprep.subr.mxu0 0.0
  %1439 = vmatpush1.msra.mxu0 0.0
  %1440 = vmatprep.mubr.f32.mxu0 0.0
  %1441 = vmatmul.mubr.f32.gmra.mrb[0].mxu0 %v1374
  %v1442 = vpop.f32.mrb[0].mxu0
  %v1443 = vadd.f32 0.0, %v1442
  %v1444 = vpop.f32.mrb[0].mxu0
  %1445 = vdwg.mxu0
  %s1446 = scalar_lea.vmem %s4, 256
  %v1447 = vld [vmem:[%s1446] sm:$0xff]
  %v1448 = vld [vmem:[%s1446 + $0x8] sm:$0xff]
  %v1449 = vld [vmem:[%s1446 + $0x10] sm:$0xff]
  %v1450 = vld [vmem:[%s1446 + $0x18] sm:$0xff]
  %v1452 = vsel %vm143, %v1443, 0
  %1454 = vmatprep.subr.mxu0 0.0
  %1455 = vmatpush1.msra.mxu0 %v1447
  %1456 = vmatprep.subr.mxu0 0.0
  %1457 = vmatpush1.msra.mxu0 %v1448
  %1458 = vmatprep.subr.mxu0 0.0
  %1459 = vmatpush1.msra.mxu0 %v1449
  %1460 = vmatprep.subr.mxu0 0.0
  %1461 = vmatpush1.msra.mxu0 %v1450
  %1462 = vmatprep.subr.mxu0 0.0
  %1463 = vmatpush1.msra.mxu0 0.0
  %1464 = vmatprep.subr.mxu0 0.0
  %1465 = vmatpush1.msra.mxu0 0.0
  %1466 = vmatprep.subr.mxu0 0.0
  %1467 = vmatpush1.msra.mxu0 0.0
  %1468 = vmatprep.subr.mxu0 0.0
  %1469 = vmatpush1.msra.mxu0 0.0
  %1470 = vmatprep.subr.mxu0 0.0
  %1471 = vmatpush1.msra.mxu0 0.0
  %1472 = vmatprep.subr.mxu0 0.0
  %1473 = vmatpush1.msra.mxu0 0.0
  %1474 = vmatprep.subr.mxu0 0.0
  %1475 = vmatpush1.msra.mxu0 0.0
  %1476 = vmatprep.subr.mxu0 0.0
  %1477 = vmatpush1.msra.mxu0 0.0
  %1478 = vmatprep.subr.mxu0 0.0
  %1479 = vmatpush1.msra.mxu0 0.0
  %1480 = vmatprep.subr.mxu0 0.0
  %1481 = vmatpush1.msra.mxu0 0.0
  %1482 = vmatprep.subr.mxu0 0.0
  %1483 = vmatpush1.msra.mxu0 0.0
  %1484 = vmatprep.subr.mxu0 0.0
  %1485 = vmatpush1.msra.mxu0 0.0
  %1486 = vmatprep.subr.mxu0 0.0
  %1487 = vmatpush1.msra.mxu0 0.0
  %1488 = vmatprep.subr.mxu0 0.0
  %1489 = vmatpush1.msra.mxu0 0.0
  %1490 = vmatprep.subr.mxu0 0.0
  %1491 = vmatpush1.msra.mxu0 0.0
  %1492 = vmatprep.subr.mxu0 0.0
  %1493 = vmatpush1.msra.mxu0 0.0
  %1494 = vmatprep.subr.mxu0 0.0
  %1495 = vmatpush1.msra.mxu0 0.0
  %1496 = vmatprep.subr.mxu0 0.0
  %1497 = vmatpush1.msra.mxu0 0.0
  %1498 = vmatprep.subr.mxu0 0.0
  %1499 = vmatpush1.msra.mxu0 0.0
  %1500 = vmatprep.subr.mxu0 0.0
  %1501 = vmatpush1.msra.mxu0 0.0
  %1502 = vmatprep.subr.mxu0 0.0
  %1503 = vmatpush1.msra.mxu0 0.0
  %1504 = vmatprep.subr.mxu0 0.0
  %1505 = vmatpush1.msra.mxu0 0.0
  %1506 = vmatprep.subr.mxu0 0.0
  %1507 = vmatpush1.msra.mxu0 0.0
  %1508 = vmatprep.subr.mxu0 0.0
  %1509 = vmatpush1.msra.mxu0 0.0
  %1510 = vmatprep.subr.mxu0 0.0
  %1511 = vmatpush1.msra.mxu0 0.0
  %1512 = vmatprep.subr.mxu0 0.0
  %1513 = vmatpush1.msra.mxu0 0.0
  %1514 = vmatprep.subr.mxu0 0.0
  %1515 = vmatpush1.msra.mxu0 0.0
  %1516 = vmatprep.subr.mxu0 0.0
  %1517 = vmatpush1.msra.mxu0 0.0
  %1518 = vmatprep.mubr.f32.mxu0 0.0
  %1519 = vmatmul.mubr.f32.gmra.mrb[0].mxu0 %v1452
  %v1520 = vpop.f32.mrb[0].mxu0
  %v1521 = vadd.f32 0.0, %v1520
  %v1522 = vpop.f32.mrb[0].mxu0
  %1523 = vdwg.mxu0
  %v1524 = vadd.f32 %v1370, %v1521
  %v1525 = vld [vmem:[%s5] sm:$0x1]
  %v1527 = vlaneseq
  %v1528 = vshrl.u32 %v1527, 7
  %v1529 = vsub.s32 0, %v1528
  %v1530 = vrot.slane %v1525, %v1529
  %v1532 = vadd.f32 %v1524, %v1530
  %v1533 = vmax.f32 %v1532, 0.0
  %1534 = vst [vmem:[%s6] sm:$0xff] %v1533
  // Predicated region
  $region26: #{forward.1} parent=0 // pred_check
    _
  $region27: #{forward.1} parent=0 // pred_check_branch
    %1536 = sbr.rel (0) target = $region29
  $region28: #{forward.1} parent=0 // pred_region
    _
  $region29: #{forward.1} parent=0 // pred_fallthru
    _
  // Predicated region
  $region30: #{forward.1} parent=0 // pred_check
    _
  $region31: #{forward.1} parent=0 // pred_check_branch
    %1538 = sbr.rel (0) target = $region33
  $region32: #{forward.1} parent=0 // pred_region
    _
  $region33: #{forward.1} parent=0 // pred_fallthru
    _

</llo_original>
